<compile_context>
chip_gen: v5e
topology: v5e:2x2
jax: 0.10.0
libtpu: 0.0.40
codegen_flags: <defaults>
</compile_context>

<pallas_src>
import functools

import jax
import jax.numpy as jnp
import numpy as np
from jax import lax
from jax.experimental import pallas as pl
from jax.experimental.pallas import tpu as pltpu


def _round_up(v, m):
    return ((v + m - 1) // m) * m


def _cdiv(a, b):
    return -(-a // b)


# ---------------------------------------------------------------------------
# Kernel
# ---------------------------------------------------------------------------
def _fused_mlp_kernel(alpha_ref, x_ref, *refs, sizes, pads):
    """Whole-MLP forward on one batch tile.

    alpha_ref : SMEM (max(nhidden,1),) f32          SoftExponential alphas
    x_ref     : VMEM (tile_b, insize)               input tile (unpadded columns)
    refs      : w_0..w_{L-1} (in_pad_k, out_pad_k)  zero-padded, VMEM resident
                b_0..b_{L-1} (1, out_pad_k)
                o_ref (tile_b, outsize)             output tile (unpadded columns)
                h_ref (tile_b, max_pad) scratch     activation, model dtype
    """
    n_layers = len(sizes) - 1
    w_refs = refs[:n_layers]
    b_refs = refs[n_layers:2 * n_layers]
    o_ref = refs[2 * n_layers]
    h_ref = refs[2 * n_layers + 1]

    tile_b = x_ref.shape[0]
    in0, in0_pad = sizes[0], pads[0]

    # Stage input tile into the padded activation scratch (zero the pad columns).
    if in0 == in0_pad:
        h_ref[:, :in0_pad] = x_ref[...].astype(h_ref.dtype)
    else:
        h_ref[:, :in0_pad] = jnp.zeros((tile_b, in0_pad), h_ref.dtype)
        h_ref[:, :in0] = x_ref[...].astype(h_ref.dtype)

    for k in range(n_layers):
        in_k = sizes[k]
        out_k = sizes[k + 1]
        in_pad = pads[k]
        out_pad = pads[k + 1]

        if k < n_layers - 1:
            # SoftExponential in-place on this layer's live slice, gated on the
            # scalar alpha (alpha == 0 -> identity, nothing executes).  Math in
            # f32, stored back in the model dtype.
            alpha = alpha_ref[k]
            need_mask = in_k != in_pad  # only alpha<0 can NaN on padded zeros
            if need_mask:
                col = lax.broadcasted_iota(jnp.int32, (1, in_pad), 1)
                valid = col < in_k

            @pl.when(alpha < 0.0)
            def _():
                h = h_ref[:, :in_pad].astype(jnp.float32)
                v = -jnp.log(1.0 - alpha * (h + alpha)) / alpha
                if need_mask:
                    v = jnp.where(valid, v, 0.0)
                h_ref[:, :in_pad] = v.astype(h_ref.dtype)

            @pl.when(alpha > 0.0)
            def _():
                h = h_ref[:, :in_pad].astype(jnp.float32)
                v = (jnp.exp(alpha * h) - 1.0) / alpha + alpha
                # padded columns become alpha (finite); the zero-padded weight
                # rows of the next matmul kill them, so no mask is needed here.
                h_ref[:, :in_pad] = v.astype(h_ref.dtype)

        # Per-layer sized matmul: (tile_b, in_pad) x (in_pad, out_pad), f32 acc.
        y = jnp.dot(h_ref[:, :in_pad], w_refs[k][...],
                    preferred_element_type=jnp.float32)
        y = y + b_refs[k][...].astype(jnp.float32)

        if k == n_layers - 1:
            o_ref[...] = y[:, :out_k].astype(o_ref.dtype)
        else:
            h_ref[:, :out_pad] = y.astype(h_ref.dtype)


# ---------------------------------------------------------------------------
# One-time parameter preparation (hoisted out of the per-call path)
# ---------------------------------------------------------------------------
def prepare_mlp_params(weights, biases, compute_dtype=None):
    """Pad each layer's weight/bias to its own 128-multiple dims (one time)."""
    n_layers = len(weights)
    sizes = tuple([int(weights[0].shape[0])] + [int(w.shape[1]) for w in weights])
    pads = tuple(_round_up(s, 128) for s in sizes)
    if compute_dtype is None:
        compute_dtype = weights[0].dtype  # pass jnp.bfloat16 for bf16 execution
    w_list, b_list = [], []
    for k in range(n_layers):
        wp = jnp.zeros((pads[k], pads[k + 1]), compute_dtype)
        wp = wp.at[:sizes[k], :sizes[k + 1]].set(jnp.asarray(weights[k], compute_dtype))
        bp = jnp.zeros((1, pads[k + 1]), compute_dtype)
        bp = bp.at[0, :sizes[k + 1]].set(jnp.asarray(biases[k], compute_dtype))
        w_list.append(wp)
        b_list.append(bp)
    return sizes, pads, tuple(w_list), tuple(b_list)


# ---------------------------------------------------------------------------
# pallas_call wrapper
# ---------------------------------------------------------------------------
_PIPELINE_CACHE = {"single_buffer_ok": None}


def _pallas_mlp_call(x_p, alpha_arr, prepared, tile_b, out_dtype, single_buffer):
    sizes, pads, w_list, b_list = prepared
    b_pad = x_p.shape[0]
    insize, outsize = sizes[0], sizes[-1]
    max_h = max(pads[:-1])
    compute_dtype = w_list[0].dtype

    def resident_spec(shape):
        # Constant index_map -> fetched once, VMEM resident across the batch grid.
        if single_buffer:
            return pl.BlockSpec(shape, lambda i: (0, 0),
                                pipeline_mode=pl.Buffered(1))
        return pl.BlockSpec(shape, lambda i: (0, 0))

    in_specs = [
        pl.BlockSpec(memory_space=pltpu.SMEM),             # alphas
        pl.BlockSpec((tile_b, insize), lambda i: (i, 0)),  # x tile (real columns)
    ]
    in_specs += [resident_spec(w.shape) for w in w_list]
    in_specs += [resident_spec(b.shape) for b in b_list]

    # VMEM budget: (worst-case double-buffered) weights + streamed I/O tiles
    # + activation scratch + f32 temporaries, with headroom; cap below the
    # per-TC physical VMEM so it is v7x-safe.
    itemsize = jnp.dtype(compute_dtype).itemsize
    wb_bytes = sum(int(np.prod(a.shape)) * itemsize for a in (*w_list, *b_list))
    io_bytes = 2 * tile_b * (insize * jnp.dtype(x_p.dtype).itemsize
                             + outsize * jnp.dtype(out_dtype).itemsize)
    scratch_bytes = tile_b * max_h * itemsize
    temp_bytes = 2 * tile_b * max(pads) * 4
    footprint = 2 * wb_bytes + io_bytes + scratch_bytes + temp_bytes + (4 << 20)
    try:
        vmem_cap = int(pltpu.get_tpu_info().vmem_capacity_bytes)
    except Exception:
        vmem_cap = 64 << 20  # conservative: v7x per-TC VMEM
    vmem_limit = int(min(max(footprint, 32 << 20), int(vmem_cap * 0.875)))

    kernel = functools.partial(_fused_mlp_kernel, sizes=sizes, pads=pads)

    return pl.pallas_call(
        kernel,
        out_shape=jax.ShapeDtypeStruct((b_pad, outsize), out_dtype),
        grid=(b_pad // tile_b,),
        in_specs=in_specs,
        out_specs=pl.BlockSpec((tile_b, outsize), lambda i: (i, 0)),
        scratch_shapes=[pltpu.VMEM((tile_b, max_h), compute_dtype)],
        compiler_params=pltpu.CompilerParams(
            dimension_semantics=("parallel",),
            vmem_limit_bytes=vmem_limit,
        ),
    )(alpha_arr, x_p, *w_list, *b_list)


def mlp_forward_prepared(x, prepared, alphas):
    """MLP forward from pre-padded params; x: (batch, insize)."""
    sizes, pads, w_list, b_list = prepared
    n_layers = len(w_list)
    batch = x.shape[0]
    assert x.shape[1] == sizes[0]

    # Batch tiling: tiny batches -> one tile; otherwise >= 2 grid steps (so the
    # 'parallel' axis can shard over two TensorCores on v7x), <= 512-row tiles.
    b8 = _round_up(max(batch, 1), 8)
    if b8 <= 16:
        tile_b = b8
    else:
        tile_b = min(512, _round_up(_cdiv(b8, 2), 8))
    b_pad = _round_up(batch, tile_b)
    if b_pad != batch:
        x_p = jnp.zeros((b_pad, sizes[0]), x.dtype).at[:batch].set(x)
    else:
        x_p = x

    n_hidden = n_layers - 1
    alpha_arr = jnp.zeros((max(n_hidden, 1),), jnp.float32)
    if n_hidden > 0:
        alpha_arr = alpha_arr.at[:n_hidden].set(
            jnp.asarray(alphas, jnp.float32).reshape(n_hidden))

    sb = _PIPELINE_CACHE["single_buffer_ok"]
    if sb is None:
        try:
            out = _pallas_mlp_call(x_p, alpha_arr, prepared, tile_b, x.dtype, True)
            jax.block_until_ready(out)
            _PIPELINE_CACHE["single_buffer_ok"] = True
        except Exception:
            _PIPELINE_CACHE["single_buffer_ok"] = False
            out = _pallas_mlp_call(x_p, alpha_arr, prepared, tile_b, x.dtype, False)
    else:
        out = _pallas_mlp_call(x_p, alpha_arr, prepared, tile_b, x.dtype, sb)

    return out[:batch]


def mlp_forward(x, weights, biases, alphas):
    """Convenience wrapper (prepares params each call; prefer prepare-once)."""
    return mlp_forward_prepared(x, prepare_mlp_params(weights, biases), alphas)


# ---------------------------------------------------------------------------
# Pure-JAX reference + parameter init
# ---------------------------------------------------------------------------
def mlp_reference(x, weights, biases, alphas):
    def soft_exp(v, a):
        safe = jnp.where(a == 0.0, 1.0, a)
        neg = -jnp.log(1.0 - a * (v + a)) / safe
        pos = (jnp.exp(a * v) - 1.0) / safe + a
        return jnp.where(a == 0.0, v, jnp.where(a < 0.0, neg, pos))

    n_layers = len(weights)
    h = x
    for k in range(n_layers):
        if k < n_layers - 1:
            h = soft_exp(h, alphas[k])
        h = h @ weights[k] + biases[k]
    return h


def init_mlp_params(key, insize, hsizes, outsize):
    sizes = [insize] + list(hsizes) + [outsize]
    weights, biases = [], []
    for k in range(len(sizes) - 1):
        key, kw, kb = jax.random.split(key, 3)
        fan_in, fan_out = sizes[k], sizes[k + 1]
        bound = 1.0 / np.sqrt(fan_in)
        w = jax.random.uniform(kw, (fan_in, fan_out), jnp.float32, -bound, bound)
        b = jax.random.uniform(kb, (fan_out,), jnp.float32, -bound, bound)
        weights.append(w)
        biases.append(b)
    alphas = [jnp.float32(0.0) for _ in range(len(hsizes))]
    return weights, biases, alphas


if __name__ == "__main__":
    key = jax.random.PRNGKey(0)

    # Config 1: module-default-ish sizes; exercises all alpha branches.
    batch, insize, hsizes, outsize = 8, 32, [64, 64], 16
    key, kx = jax.random.split(key)
    x = jax.random.normal(kx, (batch, insize), dtype=jnp.float32)
    weights, biases, _ = init_mlp_params(key, insize, hsizes, outsize)
    prepared = prepare_mlp_params(weights, biases)  # one-time padding

    for alpha_cfg in ([0.0, 0.0], [0.3, 0.2], [-0.05, -0.05], [0.25, -0.05]):
        alphas = [jnp.float32(a) for a in alpha_cfg]
        out = jax.block_until_ready(mlp_forward_prepared(x, prepared, alphas))
        ref = mlp_reference(x, weights, biases, alphas)
        np.testing.assert_allclose(np.asarray(out), np.asarray(ref),
                                   rtol=2e-5, atol=2e-5)

    # Config 2: ragged (non-128) sizes + multi-step batch grid + negative alpha.
    batch2, insize2, hsizes2, outsize2 = 300, 20, [50, 90], 7
    key, kx2, kp2 = jax.random.split(key, 3)
    x2 = jax.random.normal(kx2, (batch2, insize2), dtype=jnp.float32)
    weights2, biases2, _ = init_mlp_params(kp2, insize2, hsizes2, outsize2)
    prepared2 = prepare_mlp_params(weights2, biases2)
    alphas2 = [jnp.float32(0.15), jnp.float32(-0.2)]
    out2 = jax.block_until_ready(mlp_forward_prepared(x2, prepared2, alphas2))
    ref2 = mlp_reference(x2, weights2, biases2, alphas2)
    np.testing.assert_allclose(np.asarray(out2), np.asarray(ref2),
                               rtol=5e-5, atol=5e-5)

    print("KERNEL_OK")
</pallas_src>

<mosaic_0001>
module attributes {stable_mosaic.version = 11 : i64} {
  func.func @_fused_mlp_kernel(%arg0: i32, %arg1: memref<2xf32, #tpu.memory_space<smem>>, %arg2: memref<8x32xf32, #tpu.memory_space<vmem>>, %arg3: memref<128x128xf32, #tpu.memory_space<vmem>>, %arg4: memref<128x128xf32, #tpu.memory_space<vmem>>, %arg5: memref<128x128xf32, #tpu.memory_space<vmem>>, %arg6: memref<1x128xf32, #tpu.memory_space<vmem>>, %arg7: memref<1x128xf32, #tpu.memory_space<vmem>>, %arg8: memref<1x128xf32, #tpu.memory_space<vmem>>, %arg9: memref<8x16xf32, #tpu.memory_space<vmem>>, %arg10: memref<8x128xf32, #tpu.memory_space<vmem>>) attributes {dimension_semantics = [#tpu.dimension_semantics<parallel>], iteration_bounds = array<i64: 1>, scalar_prefetch = 0 : i64, scratch_operands = 1 : i64, tpu.core_type = #tpu.core_type<tc>, window_params = [{transform_indices = @transform_0, window_bounds = array<i64: 2>}, {transform_indices = @transform_1, window_bounds = array<i64: 8, 32>}, {pipeline_mode = #tpu.pipeline_mode<synchronous>, transform_indices = @transform_2, window_bounds = array<i64: 128, 128>}, {pipeline_mode = #tpu.pipeline_mode<synchronous>, transform_indices = @transform_3, window_bounds = array<i64: 128, 128>}, {pipeline_mode = #tpu.pipeline_mode<synchronous>, transform_indices = @transform_4, window_bounds = array<i64: 128, 128>}, {pipeline_mode = #tpu.pipeline_mode<synchronous>, transform_indices = @transform_5, window_bounds = array<i64: 1, 128>}, {pipeline_mode = #tpu.pipeline_mode<synchronous>, transform_indices = @transform_6, window_bounds = array<i64: 1, 128>}, {pipeline_mode = #tpu.pipeline_mode<synchronous>, transform_indices = @transform_7, window_bounds = array<i64: 1, 128>}, {transform_indices = @transform_8, window_bounds = array<i64: 8, 16>}]} {
    %cst = arith.constant 0.000000e+00 : f32
    %0 = vector.broadcast %cst : f32 to vector<8x128xf32>
    %c0 = arith.constant 0 : index
    %c0_0 = arith.constant 0 : index
    %1 = vector.load %arg10[%c0, %c0_0] : memref<8x128xf32, #tpu.memory_space<vmem>>, vector<8x128xf32>
    tpu.vector_store %arg10[%c0, %c0_0], %0 {strides = array<i32>} : memref<8x128xf32, #tpu.memory_space<vmem>>, vector<8x128xf32>,
    %c0_1 = arith.constant 0 : index
    %c0_2 = arith.constant 0 : index
    %2 = vector.load %arg2[%c0_1, %c0_2] : memref<8x32xf32, #tpu.memory_space<vmem>>, vector<8x32xf32>
    %c0_3 = arith.constant 0 : index
    %c0_4 = arith.constant 0 : index
    %3 = vector.load %arg10[%c0_3, %c0_4] : memref<8x128xf32, #tpu.memory_space<vmem>>, vector<8x32xf32>
    tpu.vector_store %arg10[%c0_3, %c0_4], %2 {strides = array<i32>} : memref<8x128xf32, #tpu.memory_space<vmem>>, vector<8x32xf32>,
    %c0_5 = arith.constant 0 : index
    %4 = memref.load %arg1[%c0_5] : memref<2xf32, #tpu.memory_space<smem>>
    %5 = tpu.iota {dimensions = array<i32: 1>} : vector<1x128xi32>
    %c32_i32 = arith.constant 32 : i32
    %6 = vector.broadcast %c32_i32 : i32 to vector<1x128xi32>
    %7 = arith.cmpi slt, %5, %6 : vector<1x128xi32>
    %cst_6 = arith.constant 0.000000e+00 : f32
    %8 = arith.cmpf olt, %4, %cst_6 : f32
    %9 = arith.extui %8 : i1 to i32
    %c0_i32 = arith.constant 0 : i32
    %10 = arith.cmpi ne, %9, %c0_i32 : i32
    scf.if %10 {
      %c0_40 = arith.constant 0 : index
      %c0_41 = arith.constant 0 : index
      %46 = vector.load %arg10[%c0_40, %c0_41] : memref<8x128xf32, #tpu.memory_space<vmem>>, vector<8x128xf32>
      %47 = vector.broadcast %4 : f32 to vector<8x128xf32>
      %48 = arith.addf %46, %47 : vector<8x128xf32>
      %49 = vector.broadcast %4 : f32 to vector<8x128xf32>
      %50 = arith.mulf %49, %48 : vector<8x128xf32>
      %cst_42 = arith.constant 1.000000e+00 : f32
      %51 = vector.broadcast %cst_42 : f32 to vector<8x128xf32>
      %52 = arith.subf %51, %50 : vector<8x128xf32>
      %53 = math.log %52 : vector<8x128xf32>
      %cst_43 = arith.constant 0.000000e+00 : f32
      %54 = vector.broadcast %cst_43 : f32 to vector<8x128xf32>
      %55 = arith.subf %54, %53 : vector<8x128xf32>
      %56 = vector.broadcast %4 : f32 to vector<8x128xf32>
      %57 = arith.divf %55, %56 : vector<8x128xf32>
      %cst_44 = arith.constant 0.000000e+00 : f32
      %58 = vector.shape_cast %7 : vector<1x128xi1> to vector<1x128xi1>
      %59 = vector.broadcast %58 : vector<1x128xi1> to vector<8x128xi1>
      %60 = vector.broadcast %cst_44 : f32 to vector<8x128xf32>
      %61 = arith.select %59, %57, %60 : vector<8x128xi1>, vector<8x128xf32>
      %c0_45 = arith.constant 0 : index
      %c0_46 = arith.constant 0 : index
      %62 = vector.load %arg10[%c0_45, %c0_46] : memref<8x128xf32, #tpu.memory_space<vmem>>, vector<8x128xf32>
      tpu.vector_store %arg10[%c0_45, %c0_46], %61 {strides = array<i32>} : memref<8x128xf32, #tpu.memory_space<vmem>>, vector<8x128xf32>,
    } else {
    }
    %cst_7 = arith.constant 0.000000e+00 : f32
    %11 = arith.cmpf ogt, %4, %cst_7 : f32
    %12 = arith.extui %11 : i1 to i32
    %c0_i32_8 = arith.constant 0 : i32
    %13 = arith.cmpi ne, %12, %c0_i32_8 : i32
    scf.if %13 {
      %c0_40 = arith.constant 0 : index
      %c0_41 = arith.constant 0 : index
      %46 = vector.load %arg10[%c0_40, %c0_41] : memref<8x128xf32, #tpu.memory_space<vmem>>, vector<8x128xf32>
      %47 = vector.broadcast %4 : f32 to vector<8x128xf32>
      %48 = arith.mulf %47, %46 : vector<8x128xf32>
      %49 = math.exp %48 : vector<8x128xf32>
      %cst_42 = arith.constant 1.000000e+00 : f32
      %50 = vector.broadcast %cst_42 : f32 to vector<8x128xf32>
      %51 = arith.subf %49, %50 : vector<8x128xf32>
      %52 = vector.broadcast %4 : f32 to vector<8x128xf32>
      %53 = arith.divf %51, %52 : vector<8x128xf32>
      %54 = vector.broadcast %4 : f32 to vector<8x128xf32>
      %55 = arith.addf %53, %54 : vector<8x128xf32>
      %c0_43 = arith.constant 0 : index
      %c0_44 = arith.constant 0 : index
      %56 = vector.load %arg10[%c0_43, %c0_44] : memref<8x128xf32, #tpu.memory_space<vmem>>, vector<8x128xf32>
      tpu.vector_store %arg10[%c0_43, %c0_44], %55 {strides = array<i32>} : memref<8x128xf32, #tpu.memory_space<vmem>>, vector<8x128xf32>,
    } else {
    }
    %c0_9 = arith.constant 0 : index
    %c0_10 = arith.constant 0 : index
    %14 = vector.load %arg10[%c0_9, %c0_10] : memref<8x128xf32, #tpu.memory_space<vmem>>, vector<8x128xf32>
    %c0_11 = arith.constant 0 : index
    %c0_12 = arith.constant 0 : index
    %15 = vector.load %arg3[%c0_11, %c0_12] : memref<128x128xf32, #tpu.memory_space<vmem>>, vector<128x128xf32>
    %cst_13 = arith.constant dense<0.000000e+00> : vector<8x128xf32>
    %16 = tpu.matmul %14, %15, %cst_13 {dimension_numbers = #tpu.dot_dimension_numbers<[1], [0], [0], [1], [0, 0, 1, 1], [], []>} : vector<8x128xf32>, vector<128x128xf32>, vector<8x128xf32> -> vector<8x128xf32>
    %c0_14 = arith.constant 0 : index
    %c0_15 = arith.constant 0 : index
    %17 = vector.load %arg6[%c0_14, %c0_15] : memref<1x128xf32, #tpu.memory_space<vmem>>, vector<1x128xf32>
    %18 = vector.broadcast %17 : vector<1x128xf32> to vector<8x128xf32>
    %19 = arith.addf %16, %18 : vector<8x128xf32>
    %c0_16 = arith.constant 0 : index
    %c0_17 = arith.constant 0 : index
    %20 = vector.load %arg10[%c0_16, %c0_17] : memref<8x128xf32, #tpu.memory_space<vmem>>, vector<8x128xf32>
    tpu.vector_store %arg10[%c0_16, %c0_17], %19 {strides = array<i32>} : memref<8x128xf32, #tpu.memory_space<vmem>>, vector<8x128xf32>,
    %c1 = arith.constant 1 : index
    %21 = memref.load %arg1[%c1] : memref<2xf32, #tpu.memory_space<smem>>
    %22 = tpu.iota {dimensions = array<i32: 1>} : vector<1x128xi32>
    %c64_i32 = arith.constant 64 : i32
    %23 = vector.broadcast %c64_i32 : i32 to vector<1x128xi32>
    %24 = arith.cmpi slt, %22, %23 : vector<1x128xi32>
    %cst_18 = arith.constant 0.000000e+00 : f32
    %25 = arith.cmpf olt, %21, %cst_18 : f32
    %26 = arith.extui %25 : i1 to i32
    %c0_i32_19 = arith.constant 0 : i32
    %27 = arith.cmpi ne, %26, %c0_i32_19 : i32
    scf.if %27 {
      %c0_40 = arith.constant 0 : index
      %c0_41 = arith.constant 0 : index
      %46 = vector.load %arg10[%c0_40, %c0_41] : memref<8x128xf32, #tpu.memory_space<vmem>>, vector<8x128xf32>
      %47 = vector.broadcast %21 : f32 to vector<8x128xf32>
      %48 = arith.addf %46, %47 : vector<8x128xf32>
      %49 = vector.broadcast %21 : f32 to vector<8x128xf32>
      %50 = arith.mulf %49, %48 : vector<8x128xf32>
      %cst_42 = arith.constant 1.000000e+00 : f32
      %51 = vector.broadcast %cst_42 : f32 to vector<8x128xf32>
      %52 = arith.subf %51, %50 : vector<8x128xf32>
      %53 = math.log %52 : vector<8x128xf32>
      %cst_43 = arith.constant 0.000000e+00 : f32
      %54 = vector.broadcast %cst_43 : f32 to vector<8x128xf32>
      %55 = arith.subf %54, %53 : vector<8x128xf32>
      %56 = vector.broadcast %21 : f32 to vector<8x128xf32>
      %57 = arith.divf %55, %56 : vector<8x128xf32>
      %cst_44 = arith.constant 0.000000e+00 : f32
      %58 = vector.shape_cast %24 : vector<1x128xi1> to vector<1x128xi1>
      %59 = vector.broadcast %58 : vector<1x128xi1> to vector<8x128xi1>
      %60 = vector.broadcast %cst_44 : f32 to vector<8x128xf32>
      %61 = arith.select %59, %57, %60 : vector<8x128xi1>, vector<8x128xf32>
      %c0_45 = arith.constant 0 : index
      %c0_46 = arith.constant 0 : index
      %62 = vector.load %arg10[%c0_45, %c0_46] : memref<8x128xf32, #tpu.memory_space<vmem>>, vector<8x128xf32>
      tpu.vector_store %arg10[%c0_45, %c0_46], %61 {strides = array<i32>} : memref<8x128xf32, #tpu.memory_space<vmem>>, vector<8x128xf32>,
    } else {
    }
    %cst_20 = arith.constant 0.000000e+00 : f32
    %28 = arith.cmpf ogt, %21, %cst_20 : f32
    %29 = arith.extui %28 : i1 to i32
    %c0_i32_21 = arith.constant 0 : i32
    %30 = arith.cmpi ne, %29, %c0_i32_21 : i32
    scf.if %30 {
      %c0_40 = arith.constant 0 : index
      %c0_41 = arith.constant 0 : index
      %46 = vector.load %arg10[%c0_40, %c0_41] : memref<8x128xf32, #tpu.memory_space<vmem>>, vector<8x128xf32>
      %47 = vector.broadcast %21 : f32 to vector<8x128xf32>
      %48 = arith.mulf %47, %46 : vector<8x128xf32>
      %49 = math.exp %48 : vector<8x128xf32>
      %cst_42 = arith.constant 1.000000e+00 : f32
      %50 = vector.broadcast %cst_42 : f32 to vector<8x128xf32>
      %51 = arith.subf %49, %50 : vector<8x128xf32>
      %52 = vector.broadcast %21 : f32 to vector<8x128xf32>
      %53 = arith.divf %51, %52 : vector<8x128xf32>
      %54 = vector.broadcast %21 : f32 to vector<8x128xf32>
      %55 = arith.addf %53, %54 : vector<8x128xf32>
      %c0_43 = arith.constant 0 : index
      %c0_44 = arith.constant 0 : index
      %56 = vector.load %arg10[%c0_43, %c0_44] : memref<8x128xf32, #tpu.memory_space<vmem>>, vector<8x128xf32>
      tpu.vector_store %arg10[%c0_43, %c0_44], %55 {strides = array<i32>} : memref<8x128xf32, #tpu.memory_space<vmem>>, vector<8x128xf32>,
    } else {
    }
    %c0_22 = arith.constant 0 : index
    %c0_23 = arith.constant 0 : index
    %31 = vector.load %arg10[%c0_22, %c0_23] : memref<8x128xf32, #tpu.memory_space<vmem>>, vector<8x128xf32>
    %c0_24 = arith.constant 0 : index
    %c0_25 = arith.constant 0 : index
    %32 = vector.load %arg4[%c0_24, %c0_25] : memref<128x128xf32, #tpu.memory_space<vmem>>, vector<128x128xf32>
    %cst_26 = arith.constant dense<0.000000e+00> : vector<8x128xf32>
    %33 = tpu.matmul %31, %32, %cst_26 {dimension_numbers = #tpu.dot_dimension_numbers<[1], [0], [0], [1], [0, 0, 1, 1], [], []>} : vector<8x128xf32>, vector<128x128xf32>, vector<8x128xf32> -> vector<8x128xf32>
    %c0_27 = arith.constant 0 : index
    %c0_28 = arith.constant 0 : index
    %34 = vector.load %arg7[%c0_27, %c0_28] : memref<1x128xf32, #tpu.memory_space<vmem>>, vector<1x128xf32>
    %35 = vector.broadcast %34 : vector<1x128xf32> to vector<8x128xf32>
    %36 = arith.addf %33, %35 : vector<8x128xf32>
    %c0_29 = arith.constant 0 : index
    %c0_30 = arith.constant 0 : index
    %37 = vector.load %arg10[%c0_29, %c0_30] : memref<8x128xf32, #tpu.memory_space<vmem>>, vector<8x128xf32>
    tpu.vector_store %arg10[%c0_29, %c0_30], %36 {strides = array<i32>} : memref<8x128xf32, #tpu.memory_space<vmem>>, vector<8x128xf32>,
    %c0_31 = arith.constant 0 : index
    %c0_32 = arith.constant 0 : index
    %38 = vector.load %arg10[%c0_31, %c0_32] : memref<8x128xf32, #tpu.memory_space<vmem>>, vector<8x128xf32>
    %c0_33 = arith.constant 0 : index
    %c0_34 = arith.constant 0 : index
    %39 = vector.load %arg5[%c0_33, %c0_34] : memref<128x128xf32, #tpu.memory_space<vmem>>, vector<128x128xf32>
    %cst_35 = arith.constant dense<0.000000e+00> : vector<8x128xf32>
    %40 = tpu.matmul %38, %39, %cst_35 {dimension_numbers = #tpu.dot_dimension_numbers<[1], [0], [0], [1], [0, 0, 1, 1], [], []>} : vector<8x128xf32>, vector<128x128xf32>, vector<8x128xf32> -> vector<8x128xf32>
    %c0_36 = arith.constant 0 : index
    %c0_37 = arith.constant 0 : index
    %41 = vector.load %arg8[%c0_36, %c0_37] : memref<1x128xf32, #tpu.memory_space<vmem>>, vector<1x128xf32>
    %42 = vector.broadcast %41 : vector<1x128xf32> to vector<8x128xf32>
    %43 = arith.addf %40, %42 : vector<8x128xf32>
    %44 = vector.extract_strided_slice %43 {offsets = [0, 0], sizes = [8, 16], strides = [1, 1]} : vector<8x128xf32> to vector<8x16xf32>
    %c0_38 = arith.constant 0 : index
    %c0_39 = arith.constant 0 : index
    %45 = vector.load %arg9[%c0_38, %c0_39] : memref<8x16xf32, #tpu.memory_space<vmem>>, vector<8x16xf32>
    tpu.vector_store %arg9[%c0_38, %c0_39], %44 {strides = array<i32>} : memref<8x16xf32, #tpu.memory_space<vmem>>, vector<8x16xf32>,
    return
  }
  func.func @transform_0(%arg0: i32) -> i32 {
    %c0_i32 = arith.constant 0 : i32
    %c0_i32_0 = arith.constant 0 : i32
    return %c0_i32 : i32
  }
  func.func @transform_1(%arg0: i32) -> (i32, i32) {
    %c0_i32 = arith.constant 0 : i32
    %c0_i32_0 = arith.constant 0 : i32
    return %arg0, %c0_i32 : i32, i32
  }
  func.func @transform_2(%arg0: i32) -> (i32, i32) {
    %c0_i32 = arith.constant 0 : i32
    %c0_i32_0 = arith.constant 0 : i32
    %c0_i32_1 = arith.constant 0 : i32
    return %c0_i32, %c0_i32_0 : i32, i32
  }
  func.func @transform_3(%arg0: i32) -> (i32, i32) {
    %c0_i32 = arith.constant 0 : i32
    %c0_i32_0 = arith.constant 0 : i32
    %c0_i32_1 = arith.constant 0 : i32
    return %c0_i32, %c0_i32_0 : i32, i32
  }
  func.func @transform_4(%arg0: i32) -> (i32, i32) {
    %c0_i32 = arith.constant 0 : i32
    %c0_i32_0 = arith.constant 0 : i32
    %c0_i32_1 = arith.constant 0 : i32
    return %c0_i32, %c0_i32_0 : i32, i32
  }
  func.func @transform_5(%arg0: i32) -> (i32, i32) {
    %c0_i32 = arith.constant 0 : i32
    %c0_i32_0 = arith.constant 0 : i32
    %c0_i32_1 = arith.constant 0 : i32
    return %c0_i32, %c0_i32_0 : i32, i32
  }
  func.func @transform_6(%arg0: i32) -> (i32, i32) {
    %c0_i32 = arith.constant 0 : i32
    %c0_i32_0 = arith.constant 0 : i32
    %c0_i32_1 = arith.constant 0 : i32
    return %c0_i32, %c0_i32_0 : i32, i32
  }
  func.func @transform_7(%arg0: i32) -> (i32, i32) {
    %c0_i32 = arith.constant 0 : i32
    %c0_i32_0 = arith.constant 0 : i32
    %c0_i32_1 = arith.constant 0 : i32
    return %c0_i32, %c0_i32_0 : i32, i32
  }
  func.func @transform_8(%arg0: i32) -> (i32, i32) {
    %c0_i32 = arith.constant 0 : i32
    %c0_i32_0 = arith.constant 0 : i32
    return %arg0, %c0_i32 : i32, i32
  }
}

module attributes {stable_mosaic.version = 11 : i64} {
  func.func @_fused_mlp_kernel(%arg0: i32, %arg1: memref<2xf32, #tpu.memory_space<smem>>, %arg2: memref<8x32xf32, #tpu.memory_space<vmem>>, %arg3: memref<128x128xf32, #tpu.memory_space<vmem>>, %arg4: memref<128x128xf32, #tpu.memory_space<vmem>>, %arg5: memref<128x128xf32, #tpu.memory_space<vmem>>, %arg6: memref<1x128xf32, #tpu.memory_space<vmem>>, %arg7: memref<1x128xf32, #tpu.memory_space<vmem>>, %arg8: memref<1x128xf32, #tpu.memory_space<vmem>>, %arg9: memref<8x16xf32, #tpu.memory_space<vmem>>, %arg10: memref<8x128xf32, #tpu.memory_space<vmem>>) attributes {dimension_semantics = [#tpu.dimension_semantics<parallel>], iteration_bounds = array<i64: 1>, scalar_prefetch = 0 : i64, scratch_operands = 1 : i64, tpu.core_type = #tpu.core_type<tc>, window_params = [{transform_indices = @transform_0, window_bounds = array<i64: 2>}, {transform_indices = @transform_1, window_bounds = array<i64: 8, 32>}, {pipeline_mode = #tpu.pipeline_mode<synchronous>, transform_indices = @transform_2, window_bounds = array<i64: 128, 128>}, {pipeline_mode = #tpu.pipeline_mode<synchronous>, transform_indices = @transform_3, window_bounds = array<i64: 128, 128>}, {pipeline_mode = #tpu.pipeline_mode<synchronous>, transform_indices = @transform_4, window_bounds = array<i64: 128, 128>}, {pipeline_mode = #tpu.pipeline_mode<synchronous>, transform_indices = @transform_5, window_bounds = array<i64: 1, 128>}, {pipeline_mode = #tpu.pipeline_mode<synchronous>, transform_indices = @transform_6, window_bounds = array<i64: 1, 128>}, {pipeline_mode = #tpu.pipeline_mode<synchronous>, transform_indices = @transform_7, window_bounds = array<i64: 1, 128>}, {transform_indices = @transform_8, window_bounds = array<i64: 8, 16>}]} {
    %cst = arith.constant 0.000000e+00 : f32
    %0 = vector.broadcast %cst : f32 to vector<8x128xf32>
    %c0 = arith.constant 0 : index
    %c0_0 = arith.constant 0 : index
    %1 = vector.load %arg10[%c0, %c0_0] : memref<8x128xf32, #tpu.memory_space<vmem>>, vector<8x128xf32>
    tpu.vector_store %arg10[%c0, %c0_0], %0 {strides = array<i32>} : memref<8x128xf32, #tpu.memory_space<vmem>>, vector<8x128xf32>,
    %c0_1 = arith.constant 0 : index
    %c0_2 = arith.constant 0 : index
    %2 = vector.load %arg2[%c0_1, %c0_2] : memref<8x32xf32, #tpu.memory_space<vmem>>, vector<8x32xf32>
    %c0_3 = arith.constant 0 : index
    %c0_4 = arith.constant 0 : index
    %3 = vector.load %arg10[%c0_3, %c0_4] : memref<8x128xf32, #tpu.memory_space<vmem>>, vector<8x32xf32>
    tpu.vector_store %arg10[%c0_3, %c0_4], %2 {strides = array<i32>} : memref<8x128xf32, #tpu.memory_space<vmem>>, vector<8x32xf32>,
    %c0_5 = arith.constant 0 : index
    %4 = memref.load %arg1[%c0_5] : memref<2xf32, #tpu.memory_space<smem>>
    %5 = tpu.iota {dimensions = array<i32: 1>} : vector<1x128xi32>
    %c32_i32 = arith.constant 32 : i32
    %6 = vector.broadcast %c32_i32 : i32 to vector<1x128xi32>
    %7 = arith.cmpi slt, %5, %6 : vector<1x128xi32>
    %cst_6 = arith.constant 0.000000e+00 : f32
    %8 = arith.cmpf olt, %4, %cst_6 : f32
    %9 = arith.extui %8 : i1 to i32
    %c0_i32 = arith.constant 0 : i32
    %10 = arith.cmpi ne, %9, %c0_i32 : i32
    scf.if %10 {
      %c0_40 = arith.constant 0 : index
      %c0_41 = arith.constant 0 : index
      %46 = vector.load %arg10[%c0_40, %c0_41] : memref<8x128xf32, #tpu.memory_space<vmem>>, vector<8x128xf32>
      %47 = vector.broadcast %4 : f32 to vector<8x128xf32>
      %48 = arith.addf %46, %47 : vector<8x128xf32>
      %49 = vector.broadcast %4 : f32 to vector<8x128xf32>
      %50 = arith.mulf %49, %48 : vector<8x128xf32>
      %cst_42 = arith.constant 1.000000e+00 : f32
      %51 = vector.broadcast %cst_42 : f32 to vector<8x128xf32>
      %52 = arith.subf %51, %50 : vector<8x128xf32>
      %53 = math.log %52 : vector<8x128xf32>
      %cst_43 = arith.constant 0.000000e+00 : f32
      %54 = vector.broadcast %cst_43 : f32 to vector<8x128xf32>
      %55 = arith.subf %54, %53 : vector<8x128xf32>
      %56 = vector.broadcast %4 : f32 to vector<8x128xf32>
      %57 = arith.divf %55, %56 : vector<8x128xf32>
      %cst_44 = arith.constant 0.000000e+00 : f32
      %58 = vector.shape_cast %7 : vector<1x128xi1> to vector<1x128xi1>
      %59 = vector.broadcast %58 : vector<1x128xi1> to vector<8x128xi1>
      %60 = vector.broadcast %cst_44 : f32 to vector<8x128xf32>
      %61 = arith.select %59, %57, %60 : vector<8x128xi1>, vector<8x128xf32>
      %c0_45 = arith.constant 0 : index
      %c0_46 = arith.constant 0 : index
      %62 = vector.load %arg10[%c0_45, %c0_46] : memref<8x128xf32, #tpu.memory_space<vmem>>, vector<8x128xf32>
      tpu.vector_store %arg10[%c0_45, %c0_46], %61 {strides = array<i32>} : memref<8x128xf32, #tpu.memory_space<vmem>>, vector<8x128xf32>,
    } else {
    }
    %cst_7 = arith.constant 0.000000e+00 : f32
    %11 = arith.cmpf ogt, %4, %cst_7 : f32
    %12 = arith.extui %11 : i1 to i32
    %c0_i32_8 = arith.constant 0 : i32
    %13 = arith.cmpi ne, %12, %c0_i32_8 : i32
    scf.if %13 {
      %c0_40 = arith.constant 0 : index
      %c0_41 = arith.constant 0 : index
      %46 = vector.load %arg10[%c0_40, %c0_41] : memref<8x128xf32, #tpu.memory_space<vmem>>, vector<8x128xf32>
      %47 = vector.broadcast %4 : f32 to vector<8x128xf32>
      %48 = arith.mulf %47, %46 : vector<8x128xf32>
      %49 = math.exp %48 : vector<8x128xf32>
      %cst_42 = arith.constant 1.000000e+00 : f32
      %50 = vector.broadcast %cst_42 : f32 to vector<8x128xf32>
      %51 = arith.subf %49, %50 : vector<8x128xf32>
      %52 = vector.broadcast %4 : f32 to vector<8x128xf32>
      %53 = arith.divf %51, %52 : vector<8x128xf32>
      %54 = vector.broadcast %4 : f32 to vector<8x128xf32>
      %55 = arith.addf %53, %54 : vector<8x128xf32>
      %c0_43 = arith.constant 0 : index
      %c0_44 = arith.constant 0 : index
      %56 = vector.load %arg10[%c0_43, %c0_44] : memref<8x128xf32, #tpu.memory_space<vmem>>, vector<8x128xf32>
      tpu.vector_store %arg10[%c0_43, %c0_44], %55 {strides = array<i32>} : memref<8x128xf32, #tpu.memory_space<vmem>>, vector<8x128xf32>,
    } else {
    }
    %c0_9 = arith.constant 0 : index
    %c0_10 = arith.constant 0 : index
    %14 = vector.load %arg10[%c0_9, %c0_10] : memref<8x128xf32, #tpu.memory_space<vmem>>, vector<8x128xf32>
    %c0_11 = arith.constant 0 : index
    %c0_12 = arith.constant 0 : index
    %15 = vector.load %arg3[%c0_11, %c0_12] : memref<128x128xf32, #tpu.memory_space<vmem>>, vector<128x128xf32>
    %cst_13 = arith.constant dense<0.000000e+00> : vector<8x128xf32>
    %16 = tpu.matmul %14, %15, %cst_13 {dimension_numbers = #tpu.dot_dimension_numbers<[1], [0], [0], [1], [0, 0, 1, 1], [], []>} : vector<8x128xf32>, vector<128x128xf32>, vector<8x128xf32> -> vector<8x128xf32>
    %c0_14 = arith.constant 0 : index
    %c0_15 = arith.constant 0 : index
    %17 = vector.load %arg6[%c0_14, %c0_15] : memref<1x128xf32, #tpu.memory_space<vmem>>, vector<1x128xf32>
    %18 = vector.broadcast %17 : vector<1x128xf32> to vector<8x128xf32>
    %19 = arith.addf %16, %18 : vector<8x128xf32>
    %c0_16 = arith.constant 0 : index
    %c0_17 = arith.constant 0 : index
    %20 = vector.load %arg10[%c0_16, %c0_17] : memref<8x128xf32, #tpu.memory_space<vmem>>, vector<8x128xf32>
    tpu.vector_store %arg10[%c0_16, %c0_17], %19 {strides = array<i32>} : memref<8x128xf32, #tpu.memory_space<vmem>>, vector<8x128xf32>,
    %c1 = arith.constant 1 : index
    %21 = memref.load %arg1[%c1] : memref<2xf32, #tpu.memory_space<smem>>
    %22 = tpu.iota {dimensions = array<i32: 1>} : vector<1x128xi32>
    %c64_i32 = arith.constant 64 : i32
    %23 = vector.broadcast %c64_i32 : i32 to vector<1x128xi32>
    %24 = arith.cmpi slt, %22, %23 : vector<1x128xi32>
    %cst_18 = arith.constant 0.000000e+00 : f32
    %25 = arith.cmpf olt, %21, %cst_18 : f32
    %26 = arith.extui %25 : i1 to i32
    %c0_i32_19 = arith.constant 0 : i32
    %27 = arith.cmpi ne, %26, %c0_i32_19 : i32
    scf.if %27 {
      %c0_40 = arith.constant 0 : index
      %c0_41 = arith.constant 0 : index
      %46 = vector.load %arg10[%c0_40, %c0_41] : memref<8x128xf32, #tpu.memory_space<vmem>>, vector<8x128xf32>
      %47 = vector.broadcast %21 : f32 to vector<8x128xf32>
      %48 = arith.addf %46, %47 : vector<8x128xf32>
      %49 = vector.broadcast %21 : f32 to vector<8x128xf32>
      %50 = arith.mulf %49, %48 : vector<8x128xf32>
      %cst_42 = arith.constant 1.000000e+00 : f32
      %51 = vector.broadcast %cst_42 : f32 to vector<8x128xf32>
      %52 = arith.subf %51, %50 : vector<8x128xf32>
      %53 = math.log %52 : vector<8x128xf32>
      %cst_43 = arith.constant 0.000000e+00 : f32
      %54 = vector.broadcast %cst_43 : f32 to vector<8x128xf32>
      %55 = arith.subf %54, %53 : vector<8x128xf32>
      %56 = vector.broadcast %21 : f32 to vector<8x128xf32>
      %57 = arith.divf %55, %56 : vector<8x128xf32>
      %cst_44 = arith.constant 0.000000e+00 : f32
      %58 = vector.shape_cast %24 : vector<1x128xi1> to vector<1x128xi1>
      %59 = vector.broadcast %58 : vector<1x128xi1> to vector<8x128xi1>
      %60 = vector.broadcast %cst_44 : f32 to vector<8x128xf32>
      %61 = arith.select %59, %57, %60 : vector<8x128xi1>, vector<8x128xf32>
      %c0_45 = arith.constant 0 : index
      %c0_46 = arith.constant 0 : index
      %62 = vector.load %arg10[%c0_45, %c0_46] : memref<8x128xf32, #tpu.memory_space<vmem>>, vector<8x128xf32>
      tpu.vector_store %arg10[%c0_45, %c0_46], %61 {strides = array<i32>} : memref<8x128xf32, #tpu.memory_space<vmem>>, vector<8x128xf32>,
    } else {
    }
    %cst_20 = arith.constant 0.000000e+00 : f32
    %28 = arith.cmpf ogt, %21, %cst_20 : f32
    %29 = arith.extui %28 : i1 to i32
    %c0_i32_21 = arith.constant 0 : i32
    %30 = arith.cmpi ne, %29, %c0_i32_21 : i32
    scf.if %30 {
      %c0_40 = arith.constant 0 : index
      %c0_41 = arith.constant 0 : index
      %46 = vector.load %arg10[%c0_40, %c0_41] : memref<8x128xf32, #tpu.memory_space<vmem>>, vector<8x128xf32>
      %47 = vector.broadcast %21 : f32 to vector<8x128xf32>
      %48 = arith.mulf %47, %46 : vector<8x128xf32>
      %49 = math.exp %48 : vector<8x128xf32>
      %cst_42 = arith.constant 1.000000e+00 : f32
      %50 = vector.broadcast %cst_42 : f32 to vector<8x128xf32>
      %51 = arith.subf %49, %50 : vector<8x128xf32>
      %52 = vector.broadcast %21 : f32 to vector<8x128xf32>
      %53 = arith.divf %51, %52 : vector<8x128xf32>
      %54 = vector.broadcast %21 : f32 to vector<8x128xf32>
      %55 = arith.addf %53, %54 : vector<8x128xf32>
      %c0_43 = arith.constant 0 : index
      %c0_44 = arith.constant 0 : index
      %56 = vector.load %arg10[%c0_43, %c0_44] : memref<8x128xf32, #tpu.memory_space<vmem>>, vector<8x128xf32>
      tpu.vector_store %arg10[%c0_43, %c0_44], %55 {strides = array<i32>} : memref<8x128xf32, #tpu.memory_space<vmem>>, vector<8x128xf32>,
    } else {
    }
    %c0_22 = arith.constant 0 : index
    %c0_23 = arith.constant 0 : index
    %31 = vector.load %arg10[%c0_22, %c0_23] : memref<8x128xf32, #tpu.memory_space<vmem>>, vector<8x128xf32>
    %c0_24 = arith.constant 0 : index
    %c0_25 = arith.constant 0 : index
    %32 = vector.load %arg4[%c0_24, %c0_25] : memref<128x128xf32, #tpu.memory_space<vmem>>, vector<128x128xf32>
    %cst_26 = arith.constant dense<0.000000e+00> : vector<8x128xf32>
    %33 = tpu.matmul %31, %32, %cst_26 {dimension_numbers = #tpu.dot_dimension_numbers<[1], [0], [0], [1], [0, 0, 1, 1], [], []>} : vector<8x128xf32>, vector<128x128xf32>, vector<8x128xf32> -> vector<8x128xf32>
    %c0_27 = arith.constant 0 : index
    %c0_28 = arith.constant 0 : index
    %34 = vector.load %arg7[%c0_27, %c0_28] : memref<1x128xf32, #tpu.memory_space<vmem>>, vector<1x128xf32>
    %35 = vector.broadcast %34 : vector<1x128xf32> to vector<8x128xf32>
    %36 = arith.addf %33, %35 : vector<8x128xf32>
    %c0_29 = arith.constant 0 : index
    %c0_30 = arith.constant 0 : index
    %37 = vector.load %arg10[%c0_29, %c0_30] : memref<8x128xf32, #tpu.memory_space<vmem>>, vector<8x128xf32>
    tpu.vector_store %arg10[%c0_29, %c0_30], %36 {strides = array<i32>} : memref<8x128xf32, #tpu.memory_space<vmem>>, vector<8x128xf32>,
    %c0_31 = arith.constant 0 : index
    %c0_32 = arith.constant 0 : index
    %38 = vector.load %arg10[%c0_31, %c0_32] : memref<8x128xf32, #tpu.memory_space<vmem>>, vector<8x128xf32>
    %c0_33 = arith.constant 0 : index
    %c0_34 = arith.constant 0 : index
    %39 = vector.load %arg5[%c0_33, %c0_34] : memref<128x128xf32, #tpu.memory_space<vmem>>, vector<128x128xf32>
    %cst_35 = arith.constant dense<0.000000e+00> : vector<8x128xf32>
    %40 = tpu.matmul %38, %39, %cst_35 {dimension_numbers = #tpu.dot_dimension_numbers<[1], [0], [0], [1], [0, 0, 1, 1], [], []>} : vector<8x128xf32>, vector<128x128xf32>, vector<8x128xf32> -> vector<8x128xf32>
    %c0_36 = arith.constant 0 : index
    %c0_37 = arith.constant 0 : index
    %41 = vector.load %arg8[%c0_36, %c0_37] : memref<1x128xf32, #tpu.memory_space<vmem>>, vector<1x128xf32>
    %42 = vector.broadcast %41 : vector<1x128xf32> to vector<8x128xf32>
    %43 = arith.addf %40, %42 : vector<8x128xf32>
    %44 = vector.extract_strided_slice %43 {offsets = [0, 0], sizes = [8, 16], strides = [1, 1]} : vector<8x128xf32> to vector<8x16xf32>
    %c0_38 = arith.constant 0 : index
    %c0_39 = arith.constant 0 : index
    %45 = vector.load %arg9[%c0_38, %c0_39] : memref<8x16xf32, #tpu.memory_space<vmem>>, vector<8x16xf32>
    tpu.vector_store %arg9[%c0_38, %c0_39], %44 {strides = array<i32>} : memref<8x16xf32, #tpu.memory_space<vmem>>, vector<8x16xf32>,
    return
  }
  func.func @transform_0(%arg0: i32) -> i32 {
    %c0_i32 = arith.constant 0 : i32
    %c0_i32_0 = arith.constant 0 : i32
    return %c0_i32 : i32
  }
  func.func @transform_1(%arg0: i32) -> (i32, i32) {
    %c0_i32 = arith.constant 0 : i32
    %c0_i32_0 = arith.constant 0 : i32
    return %arg0, %c0_i32 : i32, i32
  }
  func.func @transform_2(%arg0: i32) -> (i32, i32) {
    %c0_i32 = arith.constant 0 : i32
    %c0_i32_0 = arith.constant 0 : i32
    %c0_i32_1 = arith.constant 0 : i32
    return %c0_i32, %c0_i32_0 : i32, i32
  }
  func.func @transform_3(%arg0: i32) -> (i32, i32) {
    %c0_i32 = arith.constant 0 : i32
    %c0_i32_0 = arith.constant 0 : i32
    %c0_i32_1 = arith.constant 0 : i32
    return %c0_i32, %c0_i32_0 : i32, i32
  }
  func.func @transform_4(%arg0: i32) -> (i32, i32) {
    %c0_i32 = arith.constant 0 : i32
    %c0_i32_0 = arith.constant 0 : i32
    %c0_i32_1 = arith.constant 0 : i32
    return %c0_i32, %c0_i32_0 : i32, i32
  }
  func.func @transform_5(%arg0: i32) -> (i32, i32) {
    %c0_i32 = arith.constant 0 : i32
    %c0_i32_0 = arith.constant 0 : i32
    %c0_i32_1 = arith.constant 0 : i32
    return %c0_i32, %c0_i32_0 : i32, i32
  }
  func.func @transform_6(%arg0: i32) -> (i32, i32) {
    %c0_i32 = arith.constant 0 : i32
    %c0_i32_0 = arith.constant 0 : i32
    %c0_i32_1 = arith.constant 0 : i32
    return %c0_i32, %c0_i32_0 : i32, i32
  }
  func.func @transform_7(%arg0: i32) -> (i32, i32) {
    %c0_i32 = arith.constant 0 : i32
    %c0_i32_0 = arith.constant 0 : i32
    %c0_i32_1 = arith.constant 0 : i32
    return %c0_i32, %c0_i32_0 : i32, i32
  }
  func.func @transform_8(%arg0: i32) -> (i32, i32) {
    %c0_i32 = arith.constant 0 : i32
    %c0_i32_0 = arith.constant 0 : i32
    return %arg0, %c0_i32 : i32, i32
  }
}

</mosaic_0001>

<llo_original>
// kernel: tpu_custom_call.1
$region0: #{tpu_custom_call.1}
  #allocation0 [shape = 'u32[]', space=smem, size = 0x4, offset = 0x4, fixed_abs, tag = 'smem constant byte address 0x4 - core index']
  #allocation1 [shape = 'u32[72,128]{1,0:T(1,128)}', space=vmem, size = 0x9000, scoped, tag = 'internal scratch']
  #allocation2 [shape = 'f32[8,128]{1,0:T(8,128)}', space=vmem, size = 0x1000, scoped, tag = 'scratch operand']
  %s0 = inlined_call_operand.hbm [shape: f32[2], index: 0, kind: input, shape index: {}]
  %s1 = inlined_call_operand.hbm [shape: f32[8,32], index: 1, kind: input, shape index: {}]
  %s2 = inlined_call_operand.hbm [shape: f32[128,128], index: 2, kind: input, shape index: {}]
  %s3 = inlined_call_operand.hbm [shape: f32[128,128], index: 3, kind: input, shape index: {}]
  %s4 = inlined_call_operand.hbm [shape: f32[128,128], index: 4, kind: input, shape index: {}]
  %s5 = inlined_call_operand.vmem [shape: f32[1,128], index: 5, kind: input, shape index: {}]
  %s6 = inlined_call_operand.vmem [shape: f32[1,128], index: 6, kind: input, shape index: {}]
  %s7 = inlined_call_operand.vmem [shape: f32[1,128], index: 7, kind: input, shape index: {}]
  %s8 = inlined_call_operand.hbm [shape: f32[8,16], index: 8, kind: output, shape index: {}]
  %s9 = sld [smem:[#allocation0]]
  $region78: #{tpu_custom_call.1} parent=0
    _
  %s11 = ssub.s32 1, %s9
  %s12 = scalar_select 0, %s11, %s9
  $region1: #{tpu_custom_call.1} parent=0
    #allocation3 [shape = 'u8[512]{0}', space=smem, size = 0x200, scoped, tag = 'input window, operand 0, single buffered']
    #allocation4 [shape = 's32[1]{0}', space=sflag, size = 0x4, scoped, tag = 'scoped memory for tpu_custom_call.1']
    #allocation5 [shape = 's32[1]{0}', space=sflag, size = 0x4, scoped, tag = 'scoped memory for tpu_custom_call.1']
    #allocation6 [shape = 's32[1]{0}', space=sflag, size = 0x4, scoped, tag = 'scoped memory for tpu_custom_call.1']
    #allocation7 [shape = 'u8[4096]{0}', space=vmem, size = 0x1000, scoped, tag = 'input window, operand 1, single buffered']
    #allocation8 [shape = 'u8[65536]{0}', space=vmem, size = 0x10000, scoped, tag = 'input window, operand 2, single buffered']
    #allocation9 [shape = 's32[1]{0}', space=sflag, size = 0x4, scoped, tag = 'scoped memory for tpu_custom_call.1']
    #allocation10 [shape = 'u8[65536]{0}', space=vmem, size = 0x10000, scoped, tag = 'input window, operand 3, single buffered']
    #allocation11 [shape = 'u8[65536]{0}', space=vmem, size = 0x10000, scoped, tag = 'input window, operand 4, single buffered']
    #allocation12 [shape = 's32[1]{0}', space=sflag, size = 0x4, scoped, tag = 'scoped memory for tpu_custom_call.1']
    #allocation13 [shape = 'u8[4096]{0}', space=vmem, size = 0x1000, scoped, tag = 'output window, operand 0, single buffered']
    %13 = vsyncpa [#allocation6], 0
    %14 = vsyncpa [#allocation4], 0
    %15 = vsyncpa [#allocation9], 0
    %16 = vsyncpa [#allocation12], 0
    %17 = vsyncpa [#allocation5], 0
    // Predicated region
    $region2: #{tpu_custom_call.1} parent=1 // pred_check
      _
    $region3: #{tpu_custom_call.1} parent=1 // pred_check_branch
      %19 = sbr.rel (0) target = $region5
    $region4: #{tpu_custom_call.1} parent=1 // pred_region
      %21 = vsyncadd [#allocation6], 0
      %s23 = sshll.u32 %s0, 4
      %s24 = int_to_ptr.hbm [resolvable:$true] %s23
      %26 = dma.hbm_to_smem %s24, 16, [#allocation3], [#allocation6]
    $region5: #{tpu_custom_call.1} parent=1 // pred_fallthru
      _
    // Predicated region
    $region6: #{tpu_custom_call.1} parent=1 // pred_check
      _
    $region7: #{tpu_custom_call.1} parent=1 // pred_check_branch
      %28 = sbr.rel (0) target = $region9
    $region8: #{tpu_custom_call.1} parent=1 // pred_region
      %30 = vsyncadd [#allocation4], 0
      %s32 = sshll.u32 %s1, 4
      %s33 = int_to_ptr.hbm [resolvable:$true] %s32
      %s34 = sshll.u32 [#allocation7], 4
      %s35 = int_to_ptr.vmem [resolvable:$true] %s34
      %37 = dma.hbm_to_vmem [thread:$0]  %s33, 128, %s35, [#allocation4]
    $region9: #{tpu_custom_call.1} parent=1 // pred_fallthru
      _
    // Predicated region
    $region10: #{tpu_custom_call.1} parent=1 // pred_check
      _
    $region11: #{tpu_custom_call.1} parent=1 // pred_check_branch
      %39 = sbr.rel (0) target = $region13
    $region12: #{tpu_custom_call.1} parent=1 // pred_region
      %41 = vsyncadd [#allocation9], 0
      %s42 = sshll.u32 %s2, 4
      %s43 = int_to_ptr.hbm [resolvable:$true] %s42
      %s44 = sshll.u32 [#allocation8], 4
      %s45 = int_to_ptr.vmem [resolvable:$true] %s44
      %50 = dma.hbm_to_vmem [thread:$0]  %s43, 2048, %s45, [#allocation9], 128, 128, 8
    $region13: #{tpu_custom_call.1} parent=1 // pred_fallthru
      _
    // Predicated region
    $region14: #{tpu_custom_call.1} parent=1 // pred_check
      _
    $region15: #{tpu_custom_call.1} parent=1 // pred_check_branch
      %52 = sbr.rel (0) target = $region17
    $region16: #{tpu_custom_call.1} parent=1 // pred_region
      %54 = vsyncadd [#allocation9], 0
      %s55 = sshll.u32 %s3, 4
      %s56 = int_to_ptr.hbm [resolvable:$true] %s55
      %s57 = sshll.u32 [#allocation10], 4
      %s58 = int_to_ptr.vmem [resolvable:$true] %s57
      %63 = dma.hbm_to_vmem [thread:$0]  %s56, 2048, %s58, [#allocation9], 128, 128, 8
    $region17: #{tpu_custom_call.1} parent=1 // pred_fallthru
      _
    // Predicated region
    $region18: #{tpu_custom_call.1} parent=1 // pred_check
      _
    $region19: #{tpu_custom_call.1} parent=1 // pred_check_branch
      %65 = sbr.rel (0) target = $region21
    $region20: #{tpu_custom_call.1} parent=1 // pred_region
      %67 = vsyncadd [#allocation12], 0
      %s68 = sshll.u32 %s4, 4
      %s69 = int_to_ptr.hbm [resolvable:$true] %s68
      %s70 = sshll.u32 [#allocation11], 4
      %s71 = int_to_ptr.vmem [resolvable:$true] %s70
      %76 = dma.hbm_to_vmem [thread:$0]  %s69, 2048, %s71, [#allocation12], 128, 128, 8
    $region21: #{tpu_custom_call.1} parent=1 // pred_fallthru
      _
    // Predicated region
    $region22: #{tpu_custom_call.1} parent=1 // pred_check
      _
    $region23: #{tpu_custom_call.1} parent=1 // pred_check_branch
      %78 = sbr.rel (0) target = $region25
    $region24: #{tpu_custom_call.1} parent=1 // pred_region
      _
    $region25: #{tpu_custom_call.1} parent=1 // pred_fallthru
      _
    // Predicated region
    $region26: #{tpu_custom_call.1} parent=1 // pred_check
      _
    $region27: #{tpu_custom_call.1} parent=1 // pred_check_branch
      %80 = sbr.rel (0) target = $region29
    $region28: #{tpu_custom_call.1} parent=1 // pred_region
      _
    $region29: #{tpu_custom_call.1} parent=1 // pred_fallthru
      _
    // Predicated region
    $region30: #{tpu_custom_call.1} parent=1 // pred_check
      _
    $region31: #{tpu_custom_call.1} parent=1 // pred_check_branch
      %82 = sbr.rel (0) target = $region33
    $region32: #{tpu_custom_call.1} parent=1 // pred_region
      _
    $region33: #{tpu_custom_call.1} parent=1 // pred_fallthru
      _
    // Predicated region
    $region34: #{tpu_custom_call.1} parent=1 // pred_check
      _
    $region35: #{tpu_custom_call.1} parent=1 // pred_check_branch
      %84 = sbr.rel (0) target = $region37
    $region36: #{tpu_custom_call.1} parent=1 // pred_region
      %86 = dma.done [#allocation6], 16
    $region37: #{tpu_custom_call.1} parent=1 // pred_fallthru
      _
    // Predicated region
    $region38: #{tpu_custom_call.1} parent=1 // pred_check
      _
    $region39: #{tpu_custom_call.1} parent=1 // pred_check_branch
      %88 = sbr.rel (0) target = $region41
    $region40: #{tpu_custom_call.1} parent=1 // pred_region
      %90 = dma.done [#allocation4], 128
    $region41: #{tpu_custom_call.1} parent=1 // pred_fallthru
      _
    // Predicated region
    $region42: #{tpu_custom_call.1} parent=1 // pred_check
      _
    $region43: #{tpu_custom_call.1} parent=1 // pred_check_branch
      %92 = sbr.rel (0) target = $region45
    $region44: #{tpu_custom_call.1} parent=1 // pred_region
      %94 = dma.done [#allocation9], 2048
    $region45: #{tpu_custom_call.1} parent=1 // pred_fallthru
      _
    // Predicated region
    $region46: #{tpu_custom_call.1} parent=1 // pred_check
      _
    $region47: #{tpu_custom_call.1} parent=1 // pred_check_branch
      %96 = sbr.rel (0) target = $region49
    $region48: #{tpu_custom_call.1} parent=1 // pred_region
      %98 = dma.done [#allocation9], 2048
    $region49: #{tpu_custom_call.1} parent=1 // pred_fallthru
      _
    // Predicated region
    $region50: #{tpu_custom_call.1} parent=1 // pred_check
      _
    $region51: #{tpu_custom_call.1} parent=1 // pred_check_branch
      %100 = sbr.rel (0) target = $region53
    $region52: #{tpu_custom_call.1} parent=1 // pred_region
      %102 = dma.done [#allocation12], 2048
    $region53: #{tpu_custom_call.1} parent=1 // pred_fallthru
      _
    %103 = sfence
    %104 = vst [vmem:[#allocation2] sm:$0xff] 0.0
    %v105 = vld [vmem:[#allocation7] sm:$0xff]
    %vm106 = vcmask 261120
    %107 = vst.msk [vmem:[#allocation2] sm:$0xff] %vm106, %v105
    %s108 = sld [smem:[#allocation3]]
    %v109 = vlaneseq
    %v110 = vand.u32 %v109, 127
    %vm111 = vcmp.lt.s32.totalorder %v110, 32
    %p112 = scmp.lt.f32.partialorder %s108, 0.0
    // Predicated region
    $region54: #{tpu_custom_call.1} parent=1 // pred_check
      %p113 = pneg %p112
    $region55: #{tpu_custom_call.1} parent=1 // pred_check_branch
      %115 = sbr.rel (%p113) target = $region57
    $region56: #{tpu_custom_call.1} parent=1 // pred_region
      %v116 = vld [vmem:[#allocation2] sm:$0xff]
      %v117 = vstv %s108
      %v118 = vadd.f32 %v116, %v117
      %v119 = vmul.f32 %v117, %v118
      %v120 = vsub.f32 1.0, %v119
      %v121 = vlog2.pop %v120
      %v122 = vmul.f32 %v121, 0.6931472
      %v123 = vsub.f32 0.0, %v122
      %v124 = vrcp.pop %v117
      %v125 = vmul.f32 %v117, %v124
      %v126 = vsub.f32 1.0, %v125
      %v127 = vmul.f32 %v124, %v126
      %v128 = vadd.f32 %v124, %v127
      %vm129 = vweird.f32 %v117
      %vm130 = vweird.f32 %v124
      %vm131 = vmor %vm129, %vm130
      %v132 = vsel %vm131, %v124, %v128
      %v133 = vand.u32 2147483647, %v117
      %vm134 = vcmp.eq.f32.partialorder %v133, 8.507059e+37
      %v135 = vand.u32 %v117, 2147483648
      %v136 = vor.u32 1.1754944e-38, %v135
      %v137 = vsel %vm134, %v136, %v132
      %v138 = vmul.f32 %v123, %v137
      %v139 = vsel %vm111, 1, 0
      %vm140 = vcmp.eq.s32.totalorder %v139, 1
      %v141 = vsel %vm140, %v138, 0.0
      %142 = vst [vmem:[#allocation2] sm:$0xff] %v141
    $region57: #{tpu_custom_call.1} parent=1 // pred_fallthru
      _
    %p143 = scmp.gt.f32.partialorder %s108, 0.0
    // Predicated region
    $region58: #{tpu_custom_call.1} parent=1 // pred_check
      %p144 = pneg %p143
    $region59: #{tpu_custom_call.1} parent=1 // pred_check_branch
      %146 = sbr.rel (%p144) target = $region61
    $region60: #{tpu_custom_call.1} parent=1 // pred_region
      %v147 = vld [vmem:[#allocation2] sm:$0xff]
      %v148 = vstv %s108
      %v149 = vmul.f32 %v148, %v147
      %v150 = vmul.f32 %v149, 1.442695
      %v151 = vpow.pop %v150
      %v152 = vsub.f32 %v151, 1.0
      %v153 = vrcp.pop %v148
      %v154 = vmul.f32 %v148, %v153
      %v155 = vsub.f32 1.0, %v154
      %v156 = vmul.f32 %v153, %v155
      %v157 = vadd.f32 %v153, %v156
      %vm158 = vweird.f32 %v148
      %vm159 = vweird.f32 %v153
      %vm160 = vmor %vm158, %vm159
      %v161 = vsel %vm160, %v153, %v157
      %v162 = vand.u32 2147483647, %v148
      %vm163 = vcmp.eq.f32.partialorder %v162, 8.507059e+37
      %v164 = vand.u32 %v148, 2147483648
      %v165 = vor.u32 1.1754944e-38, %v164
      %v166 = vsel %vm163, %v165, %v161
      %v167 = vmul.f32 %v152, %v166
      %v168 = vadd.f32 %v167, %v148
      %169 = vst [vmem:[#allocation2] sm:$0xff] %v168
    $region61: #{tpu_custom_call.1} parent=1 // pred_fallthru
      _
    %v170 = vld [vmem:[#allocation2] sm:$0xff]
    %v171 = vld [vmem:[#allocation8] sm:$0xff]
    %v172 = vld [vmem:[#allocation8 + $0x8] sm:$0xff]
    %v173 = vld [vmem:[#allocation8 + $0x10] sm:$0xff]
    %v174 = vld [vmem:[#allocation8 + $0x18] sm:$0xff]
    %v175 = vld [vmem:[#allocation8 + $0x20] sm:$0xff]
    %v176 = vld [vmem:[#allocation8 + $0x28] sm:$0xff]
    %v177 = vld [vmem:[#allocation8 + $0x30] sm:$0xff]
    %v178 = vld [vmem:[#allocation8 + $0x38] sm:$0xff]
    %v179 = vld [vmem:[#allocation8 + $0x40] sm:$0xff]
    %v180 = vld [vmem:[#allocation8 + $0x48] sm:$0xff]
    %v181 = vld [vmem:[#allocation8 + $0x50] sm:$0xff]
    %v182 = vld [vmem:[#allocation8 + $0x58] sm:$0xff]
    %v183 = vld [vmem:[#allocation8 + $0x60] sm:$0xff]
    %v184 = vld [vmem:[#allocation8 + $0x68] sm:$0xff]
    %v185 = vld [vmem:[#allocation8 + $0x70] sm:$0xff]
    %v186 = vld [vmem:[#allocation8 + $0x78] sm:$0xff]
    %v187 = vld [vmem:[%s5] sm:$0x1]
    %v189 = vperm.slane %v187, 0
    %191 = vmatpush.msra.mxu0 %v186
    %192 = vmatpush.msra.mxu0 %v185
    %193 = vmatpush.msra.mxu0 %v184
    %194 = vmatpush.msra.mxu0 %v183
    %195 = vmatpush.msra.mxu0 %v182
    %196 = vmatpush.msra.mxu0 %v181
    %197 = vmatpush.msra.mxu0 %v180
    %198 = vmatpush.msra.mxu0 %v179
    %199 = vmatpush.msra.mxu0 %v178
    %200 = vmatpush.msra.mxu0 %v177
    %201 = vmatpush.msra.mxu0 %v176
    %202 = vmatpush.msra.mxu0 %v175
    %203 = vmatpush.msra.mxu0 %v174
    %204 = vmatpush.msra.mxu0 %v173
    %205 = vmatpush.msra.mxu0 %v172
    %206 = vmatpush.msra.mxu0 %v171
    %207 = vmatmul.f32.gmra.mxu0 %v170
    %v208 = vpop.f32.mrf.mxu0
    %v209 = vadd.f32 %v189, %v208
    %210 = vdwg.mxu0
    %211 = vst [vmem:[#allocation2] sm:$0xff] %v209
    %s212 = sld [smem:[#allocation3 + $0x1]]
    %vm213 = vcmp.lt.s32.totalorder %v110, 64
    %p214 = scmp.lt.f32.partialorder %s212, 0.0
    // Predicated region
    $region62: #{tpu_custom_call.1} parent=1 // pred_check
      %p215 = pneg %p214
    $region63: #{tpu_custom_call.1} parent=1 // pred_check_branch
      %217 = sbr.rel (%p215) target = $region65
    $region64: #{tpu_custom_call.1} parent=1 // pred_region
      %v218 = vld [vmem:[#allocation2] sm:$0xff]
      %v219 = vstv %s212
      %v220 = vadd.f32 %v218, %v219
      %v221 = vmul.f32 %v219, %v220
      %v222 = vsub.f32 1.0, %v221
      %v223 = vlog2.pop %v222
      %v224 = vmul.f32 %v223, 0.6931472
      %v225 = vsub.f32 0.0, %v224
      %v226 = vrcp.pop %v219
      %v227 = vmul.f32 %v219, %v226
      %v228 = vsub.f32 1.0, %v227
      %v229 = vmul.f32 %v226, %v228
      %v230 = vadd.f32 %v226, %v229
      %vm231 = vweird.f32 %v219
      %vm232 = vweird.f32 %v226
      %vm233 = vmor %vm231, %vm232
      %v234 = vsel %vm233, %v226, %v230
      %v235 = vand.u32 2147483647, %v219
      %vm236 = vcmp.eq.f32.partialorder %v235, 8.507059e+37
      %v237 = vand.u32 %v219, 2147483648
      %v238 = vor.u32 1.1754944e-38, %v237
      %v239 = vsel %vm236, %v238, %v234
      %v240 = vmul.f32 %v225, %v239
      %v241 = vsel %vm213, 1, 0
      %vm242 = vcmp.eq.s32.totalorder %v241, 1
      %v243 = vsel %vm242, %v240, 0.0
      %244 = vst [vmem:[#allocation2] sm:$0xff] %v243
    $region65: #{tpu_custom_call.1} parent=1 // pred_fallthru
      _
    %p245 = scmp.gt.f32.partialorder %s212, 0.0
    // Predicated region
    $region66: #{tpu_custom_call.1} parent=1 // pred_check
      %p246 = pneg %p245
    $region67: #{tpu_custom_call.1} parent=1 // pred_check_branch
      %248 = sbr.rel (%p246) target = $region69
    $region68: #{tpu_custom_call.1} parent=1 // pred_region
      %v249 = vld [vmem:[#allocation2] sm:$0xff]
      %v250 = vstv %s212
      %v251 = vmul.f32 %v250, %v249
      %v252 = vmul.f32 %v251, 1.442695
      %v253 = vpow.pop %v252
      %v254 = vsub.f32 %v253, 1.0
      %v255 = vrcp.pop %v250
      %v256 = vmul.f32 %v250, %v255
      %v257 = vsub.f32 1.0, %v256
      %v258 = vmul.f32 %v255, %v257
      %v259 = vadd.f32 %v255, %v258
      %vm260 = vweird.f32 %v250
      %vm261 = vweird.f32 %v255
      %vm262 = vmor %vm260, %vm261
      %v263 = vsel %vm262, %v255, %v259
      %v264 = vand.u32 2147483647, %v250
      %vm265 = vcmp.eq.f32.partialorder %v264, 8.507059e+37
      %v266 = vand.u32 %v250, 2147483648
      %v267 = vor.u32 1.1754944e-38, %v266
      %v268 = vsel %vm265, %v267, %v263
      %v269 = vmul.f32 %v254, %v268
      %v270 = vadd.f32 %v269, %v250
      %271 = vst [vmem:[#allocation2] sm:$0xff] %v270
    $region69: #{tpu_custom_call.1} parent=1 // pred_fallthru
      _
    %v272 = vld [vmem:[#allocation2] sm:$0xff]
    %v273 = vld [vmem:[#allocation10] sm:$0xff]
    %v274 = vld [vmem:[#allocation10 + $0x8] sm:$0xff]
    %v275 = vld [vmem:[#allocation10 + $0x10] sm:$0xff]
    %v276 = vld [vmem:[#allocation10 + $0x18] sm:$0xff]
    %v277 = vld [vmem:[#allocation10 + $0x20] sm:$0xff]
    %v278 = vld [vmem:[#allocation10 + $0x28] sm:$0xff]
    %v279 = vld [vmem:[#allocation10 + $0x30] sm:$0xff]
    %v280 = vld [vmem:[#allocation10 + $0x38] sm:$0xff]
    %v281 = vld [vmem:[#allocation10 + $0x40] sm:$0xff]
    %v282 = vld [vmem:[#allocation10 + $0x48] sm:$0xff]
    %v283 = vld [vmem:[#allocation10 + $0x50] sm:$0xff]
    %v284 = vld [vmem:[#allocation10 + $0x58] sm:$0xff]
    %v285 = vld [vmem:[#allocation10 + $0x60] sm:$0xff]
    %v286 = vld [vmem:[#allocation10 + $0x68] sm:$0xff]
    %v287 = vld [vmem:[#allocation10 + $0x70] sm:$0xff]
    %v288 = vld [vmem:[#allocation10 + $0x78] sm:$0xff]
    %v289 = vld [vmem:[%s6] sm:$0x1]
    %v291 = vperm.slane %v289, 0
    %293 = vmatpush.msra.mxu0 %v288
    %294 = vmatpush.msra.mxu0 %v287
    %295 = vmatpush.msra.mxu0 %v286
    %296 = vmatpush.msra.mxu0 %v285
    %297 = vmatpush.msra.mxu0 %v284
    %298 = vmatpush.msra.mxu0 %v283
    %299 = vmatpush.msra.mxu0 %v282
    %300 = vmatpush.msra.mxu0 %v281
    %301 = vmatpush.msra.mxu0 %v280
    %302 = vmatpush.msra.mxu0 %v279
    %303 = vmatpush.msra.mxu0 %v278
    %304 = vmatpush.msra.mxu0 %v277
    %305 = vmatpush.msra.mxu0 %v276
    %306 = vmatpush.msra.mxu0 %v275
    %307 = vmatpush.msra.mxu0 %v274
    %308 = vmatpush.msra.mxu0 %v273
    %309 = vmatmul.f32.gmra.mxu0 %v272
    %v310 = vpop.f32.mrf.mxu0
    %v311 = vadd.f32 %v291, %v310
    %312 = vdwg.mxu0
    %313 = vst [vmem:[#allocation2] sm:$0xff] %v311
    %v314 = vld [vmem:[#allocation2] sm:$0xff]
    %v315 = vld [vmem:[#allocation11] sm:$0xff]
    %v316 = vld [vmem:[#allocation11 + $0x8] sm:$0xff]
    %v317 = vld [vmem:[#allocation11 + $0x10] sm:$0xff]
    %v318 = vld [vmem:[#allocation11 + $0x18] sm:$0xff]
    %v319 = vld [vmem:[#allocation11 + $0x20] sm:$0xff]
    %v320 = vld [vmem:[#allocation11 + $0x28] sm:$0xff]
    %v321 = vld [vmem:[#allocation11 + $0x30] sm:$0xff]
    %v322 = vld [vmem:[#allocation11 + $0x38] sm:$0xff]
    %v323 = vld [vmem:[#allocation11 + $0x40] sm:$0xff]
    %v324 = vld [vmem:[#allocation11 + $0x48] sm:$0xff]
    %v325 = vld [vmem:[#allocation11 + $0x50] sm:$0xff]
    %v326 = vld [vmem:[#allocation11 + $0x58] sm:$0xff]
    %v327 = vld [vmem:[#allocation11 + $0x60] sm:$0xff]
    %v328 = vld [vmem:[#allocation11 + $0x68] sm:$0xff]
    %v329 = vld [vmem:[#allocation11 + $0x70] sm:$0xff]
    %v330 = vld [vmem:[#allocation11 + $0x78] sm:$0xff]
    %v331 = vld [vmem:[%s7] sm:$0x1]
    %v333 = vperm.slane %v331, 0
    %335 = vmatpush.msra.mxu0 %v330
    %336 = vmatpush.msra.mxu0 %v329
    %337 = vmatpush.msra.mxu0 %v328
    %338 = vmatpush.msra.mxu0 %v327
    %339 = vmatpush.msra.mxu0 %v326
    %340 = vmatpush.msra.mxu0 %v325
    %341 = vmatpush.msra.mxu0 %v324
    %342 = vmatpush.msra.mxu0 %v323
    %343 = vmatpush.msra.mxu0 %v322
    %344 = vmatpush.msra.mxu0 %v321
    %345 = vmatpush.msra.mxu0 %v320
    %346 = vmatpush.msra.mxu0 %v319
    %347 = vmatpush.msra.mxu0 %v318
    %348 = vmatpush.msra.mxu0 %v317
    %349 = vmatpush.msra.mxu0 %v316
    %350 = vmatpush.msra.mxu0 %v315
    %351 = vmatmul.f32.gmra.mxu0 %v314
    %v352 = vpop.f32.mrf.mxu0
    %v353 = vadd.f32 %v333, %v352
    %354 = vdwg.mxu0
    %vm355 = vcmask 130048
    %356 = vst.msk [vmem:[#allocation13] sm:$0xff] %vm355, %v353
    // Predicated region
    $region70: #{tpu_custom_call.1} parent=1 // pred_check
      _
    $region71: #{tpu_custom_call.1} parent=1 // pred_check_branch
      %358 = sbr.rel (0) target = $region73
    $region72: #{tpu_custom_call.1} parent=1 // pred_region
      %360 = vsyncadd [#allocation5], 0
      %s362 = sshll.u32 [#allocation13], 4
      %s363 = int_to_ptr.vmem [resolvable:$true] %s362
      %s364 = sshll.u32 %s8, 4
      %s365 = int_to_ptr.hbm [resolvable:$true] %s364
      %367 = dma.vmem_to_hbm [thread:$0]  %s363, 128, %s365, [#allocation5]
    $region73: #{tpu_custom_call.1} parent=1 // pred_fallthru
      _
    // Predicated region
    $region74: #{tpu_custom_call.1} parent=1 // pred_check
      _
    $region75: #{tpu_custom_call.1} parent=1 // pred_check_branch
      %369 = sbr.rel (0) target = $region77
    $region76: #{tpu_custom_call.1} parent=1 // pred_region
      %371 = dma.done [#allocation5], 128
    $region77: #{tpu_custom_call.1} parent=1 // pred_fallthru
      _
    %372 = vsyncpa [#allocation4], 1
    %373 = vsyncpa [#allocation9], 1
    %374 = vsyncpa [#allocation12], 1
    %375 = vsyncpa [#allocation5], 1
    %376 = vsyncpa [#allocation6], 1

// kernel: tpu_custom_call.1
$region0: #{tpu_custom_call.1}
  #allocation0 [shape = 'u32[]', space=smem, size = 0x4, offset = 0x4, fixed_abs, tag = 'smem constant byte address 0x4 - core index']
  #allocation1 [shape = 'u32[72,128]{1,0:T(1,128)}', space=vmem, size = 0x9000, scoped, tag = 'internal scratch']
  #allocation2 [shape = 'f32[8,128]{1,0:T(8,128)}', space=vmem, size = 0x1000, scoped, tag = 'scratch operand']
  %s0 = inlined_call_operand.hbm [shape: f32[2], index: 0, kind: input, shape index: {}]
  %s1 = inlined_call_operand.hbm [shape: f32[8,32], index: 1, kind: input, shape index: {}]
  %s2 = inlined_call_operand.hbm [shape: f32[128,128], index: 2, kind: input, shape index: {}]
  %s3 = inlined_call_operand.hbm [shape: f32[128,128], index: 3, kind: input, shape index: {}]
  %s4 = inlined_call_operand.hbm [shape: f32[128,128], index: 4, kind: input, shape index: {}]
  %s5 = inlined_call_operand.vmem [shape: f32[1,128], index: 5, kind: input, shape index: {}]
  %s6 = inlined_call_operand.vmem [shape: f32[1,128], index: 6, kind: input, shape index: {}]
  %s7 = inlined_call_operand.vmem [shape: f32[1,128], index: 7, kind: input, shape index: {}]
  %s8 = inlined_call_operand.hbm [shape: f32[8,16], index: 8, kind: output, shape index: {}]
  %s9 = sld [smem:[#allocation0]]
  $region78: #{tpu_custom_call.1} parent=0
    _
  %s11 = ssub.s32 1, %s9
  %s12 = scalar_select 0, %s11, %s9
  $region1: #{tpu_custom_call.1} parent=0
    #allocation3 [shape = 'u8[512]{0}', space=smem, size = 0x200, scoped, tag = 'input window, operand 0, single buffered']
    #allocation4 [shape = 's32[1]{0}', space=sflag, size = 0x4, scoped, tag = 'scoped memory for tpu_custom_call.1']
    #allocation5 [shape = 's32[1]{0}', space=sflag, size = 0x4, scoped, tag = 'scoped memory for tpu_custom_call.1']
    #allocation6 [shape = 's32[1]{0}', space=sflag, size = 0x4, scoped, tag = 'scoped memory for tpu_custom_call.1']
    #allocation7 [shape = 'u8[4096]{0}', space=vmem, size = 0x1000, scoped, tag = 'input window, operand 1, single buffered']
    #allocation8 [shape = 'u8[65536]{0}', space=vmem, size = 0x10000, scoped, tag = 'input window, operand 2, single buffered']
    #allocation9 [shape = 's32[1]{0}', space=sflag, size = 0x4, scoped, tag = 'scoped memory for tpu_custom_call.1']
    #allocation10 [shape = 'u8[65536]{0}', space=vmem, size = 0x10000, scoped, tag = 'input window, operand 3, single buffered']
    #allocation11 [shape = 'u8[65536]{0}', space=vmem, size = 0x10000, scoped, tag = 'input window, operand 4, single buffered']
    #allocation12 [shape = 's32[1]{0}', space=sflag, size = 0x4, scoped, tag = 'scoped memory for tpu_custom_call.1']
    #allocation13 [shape = 'u8[4096]{0}', space=vmem, size = 0x1000, scoped, tag = 'output window, operand 0, single buffered']
    %13 = vsyncpa [#allocation6], 0
    %14 = vsyncpa [#allocation4], 0
    %15 = vsyncpa [#allocation9], 0
    %16 = vsyncpa [#allocation12], 0
    %17 = vsyncpa [#allocation5], 0
    // Predicated region
    $region2: #{tpu_custom_call.1} parent=1 // pred_check
      _
    $region3: #{tpu_custom_call.1} parent=1 // pred_check_branch
      %19 = sbr.rel (0) target = $region5
    $region4: #{tpu_custom_call.1} parent=1 // pred_region
      %21 = vsyncadd [#allocation6], 0
      %s23 = sshll.u32 %s0, 4
      %s24 = int_to_ptr.hbm [resolvable:$true] %s23
      %26 = dma.hbm_to_smem %s24, 16, [#allocation3], [#allocation6]
    $region5: #{tpu_custom_call.1} parent=1 // pred_fallthru
      _
    // Predicated region
    $region6: #{tpu_custom_call.1} parent=1 // pred_check
      _
    $region7: #{tpu_custom_call.1} parent=1 // pred_check_branch
      %28 = sbr.rel (0) target = $region9
    $region8: #{tpu_custom_call.1} parent=1 // pred_region
      %30 = vsyncadd [#allocation4], 0
      %s32 = sshll.u32 %s1, 4
      %s33 = int_to_ptr.hbm [resolvable:$true] %s32
      %s34 = sshll.u32 [#allocation7], 4
      %s35 = int_to_ptr.vmem [resolvable:$true] %s34
      %37 = dma.hbm_to_vmem [thread:$0]  %s33, 128, %s35, [#allocation4]
    $region9: #{tpu_custom_call.1} parent=1 // pred_fallthru
      _
    // Predicated region
    $region10: #{tpu_custom_call.1} parent=1 // pred_check
      _
    $region11: #{tpu_custom_call.1} parent=1 // pred_check_branch
      %39 = sbr.rel (0) target = $region13
    $region12: #{tpu_custom_call.1} parent=1 // pred_region
      %41 = vsyncadd [#allocation9], 0
      %s42 = sshll.u32 %s2, 4
      %s43 = int_to_ptr.hbm [resolvable:$true] %s42
      %s44 = sshll.u32 [#allocation8], 4
      %s45 = int_to_ptr.vmem [resolvable:$true] %s44
      %50 = dma.hbm_to_vmem [thread:$0]  %s43, 2048, %s45, [#allocation9], 128, 128, 8
    $region13: #{tpu_custom_call.1} parent=1 // pred_fallthru
      _
    // Predicated region
    $region14: #{tpu_custom_call.1} parent=1 // pred_check
      _
    $region15: #{tpu_custom_call.1} parent=1 // pred_check_branch
      %52 = sbr.rel (0) target = $region17
    $region16: #{tpu_custom_call.1} parent=1 // pred_region
      %54 = vsyncadd [#allocation9], 0
      %s55 = sshll.u32 %s3, 4
      %s56 = int_to_ptr.hbm [resolvable:$true] %s55
      %s57 = sshll.u32 [#allocation10], 4
      %s58 = int_to_ptr.vmem [resolvable:$true] %s57
      %63 = dma.hbm_to_vmem [thread:$0]  %s56, 2048, %s58, [#allocation9], 128, 128, 8
    $region17: #{tpu_custom_call.1} parent=1 // pred_fallthru
      _
    // Predicated region
    $region18: #{tpu_custom_call.1} parent=1 // pred_check
      _
    $region19: #{tpu_custom_call.1} parent=1 // pred_check_branch
      %65 = sbr.rel (0) target = $region21
    $region20: #{tpu_custom_call.1} parent=1 // pred_region
      %67 = vsyncadd [#allocation12], 0
      %s68 = sshll.u32 %s4, 4
      %s69 = int_to_ptr.hbm [resolvable:$true] %s68
      %s70 = sshll.u32 [#allocation11], 4
      %s71 = int_to_ptr.vmem [resolvable:$true] %s70
      %76 = dma.hbm_to_vmem [thread:$0]  %s69, 2048, %s71, [#allocation12], 128, 128, 8
    $region21: #{tpu_custom_call.1} parent=1 // pred_fallthru
      _
    // Predicated region
    $region22: #{tpu_custom_call.1} parent=1 // pred_check
      _
    $region23: #{tpu_custom_call.1} parent=1 // pred_check_branch
      %78 = sbr.rel (0) target = $region25
    $region24: #{tpu_custom_call.1} parent=1 // pred_region
      _
    $region25: #{tpu_custom_call.1} parent=1 // pred_fallthru
      _
    // Predicated region
    $region26: #{tpu_custom_call.1} parent=1 // pred_check
      _
    $region27: #{tpu_custom_call.1} parent=1 // pred_check_branch
      %80 = sbr.rel (0) target = $region29
    $region28: #{tpu_custom_call.1} parent=1 // pred_region
      _
    $region29: #{tpu_custom_call.1} parent=1 // pred_fallthru
      _
    // Predicated region
    $region30: #{tpu_custom_call.1} parent=1 // pred_check
      _
    $region31: #{tpu_custom_call.1} parent=1 // pred_check_branch
      %82 = sbr.rel (0) target = $region33
    $region32: #{tpu_custom_call.1} parent=1 // pred_region
      _
    $region33: #{tpu_custom_call.1} parent=1 // pred_fallthru
      _
    // Predicated region
    $region34: #{tpu_custom_call.1} parent=1 // pred_check
      _
    $region35: #{tpu_custom_call.1} parent=1 // pred_check_branch
      %84 = sbr.rel (0) target = $region37
    $region36: #{tpu_custom_call.1} parent=1 // pred_region
      %86 = dma.done [#allocation6], 16
    $region37: #{tpu_custom_call.1} parent=1 // pred_fallthru
      _
    // Predicated region
    $region38: #{tpu_custom_call.1} parent=1 // pred_check
      _
    $region39: #{tpu_custom_call.1} parent=1 // pred_check_branch
      %88 = sbr.rel (0) target = $region41
    $region40: #{tpu_custom_call.1} parent=1 // pred_region
      %90 = dma.done [#allocation4], 128
    $region41: #{tpu_custom_call.1} parent=1 // pred_fallthru
      _
    // Predicated region
    $region42: #{tpu_custom_call.1} parent=1 // pred_check
      _
    $region43: #{tpu_custom_call.1} parent=1 // pred_check_branch
      %92 = sbr.rel (0) target = $region45
    $region44: #{tpu_custom_call.1} parent=1 // pred_region
      %94 = dma.done [#allocation9], 2048
    $region45: #{tpu_custom_call.1} parent=1 // pred_fallthru
      _
    // Predicated region
    $region46: #{tpu_custom_call.1} parent=1 // pred_check
      _
    $region47: #{tpu_custom_call.1} parent=1 // pred_check_branch
      %96 = sbr.rel (0) target = $region49
    $region48: #{tpu_custom_call.1} parent=1 // pred_region
      %98 = dma.done [#allocation9], 2048
    $region49: #{tpu_custom_call.1} parent=1 // pred_fallthru
      _
    // Predicated region
    $region50: #{tpu_custom_call.1} parent=1 // pred_check
      _
    $region51: #{tpu_custom_call.1} parent=1 // pred_check_branch
      %100 = sbr.rel (0) target = $region53
    $region52: #{tpu_custom_call.1} parent=1 // pred_region
      %102 = dma.done [#allocation12], 2048
    $region53: #{tpu_custom_call.1} parent=1 // pred_fallthru
      _
    %103 = sfence
    %104 = vst [vmem:[#allocation2] sm:$0xff] 0.0
    %v105 = vld [vmem:[#allocation7] sm:$0xff]
    %vm106 = vcmask 261120
    %107 = vst.msk [vmem:[#allocation2] sm:$0xff] %vm106, %v105
    %s108 = sld [smem:[#allocation3]]
    %v109 = vlaneseq
    %v110 = vand.u32 %v109, 127
    %vm111 = vcmp.lt.s32.totalorder %v110, 32
    %p112 = scmp.lt.f32.partialorder %s108, 0.0
    // Predicated region
    $region54: #{tpu_custom_call.1} parent=1 // pred_check
      %p113 = pneg %p112
    $region55: #{tpu_custom_call.1} parent=1 // pred_check_branch
      %115 = sbr.rel (%p113) target = $region57
    $region56: #{tpu_custom_call.1} parent=1 // pred_region
      %v116 = vld [vmem:[#allocation2] sm:$0xff]
      %v117 = vstv %s108
      %v118 = vadd.f32 %v116, %v117
      %v119 = vmul.f32 %v117, %v118
      %v120 = vsub.f32 1.0, %v119
      %v121 = vlog2.pop %v120
      %v122 = vmul.f32 %v121, 0.6931472
      %v123 = vsub.f32 0.0, %v122
      %v124 = vrcp.pop %v117
      %v125 = vmul.f32 %v117, %v124
      %v126 = vsub.f32 1.0, %v125
      %v127 = vmul.f32 %v124, %v126
      %v128 = vadd.f32 %v124, %v127
      %vm129 = vweird.f32 %v117
      %vm130 = vweird.f32 %v124
      %vm131 = vmor %vm129, %vm130
      %v132 = vsel %vm131, %v124, %v128
      %v133 = vand.u32 2147483647, %v117
      %vm134 = vcmp.eq.f32.partialorder %v133, 8.507059e+37
      %v135 = vand.u32 %v117, 2147483648
      %v136 = vor.u32 1.1754944e-38, %v135
      %v137 = vsel %vm134, %v136, %v132
      %v138 = vmul.f32 %v123, %v137
      %v139 = vsel %vm111, 1, 0
      %vm140 = vcmp.eq.s32.totalorder %v139, 1
      %v141 = vsel %vm140, %v138, 0.0
      %142 = vst [vmem:[#allocation2] sm:$0xff] %v141
    $region57: #{tpu_custom_call.1} parent=1 // pred_fallthru
      _
    %p143 = scmp.gt.f32.partialorder %s108, 0.0
    // Predicated region
    $region58: #{tpu_custom_call.1} parent=1 // pred_check
      %p144 = pneg %p143
    $region59: #{tpu_custom_call.1} parent=1 // pred_check_branch
      %146 = sbr.rel (%p144) target = $region61
    $region60: #{tpu_custom_call.1} parent=1 // pred_region
      %v147 = vld [vmem:[#allocation2] sm:$0xff]
      %v148 = vstv %s108
      %v149 = vmul.f32 %v148, %v147
      %v150 = vmul.f32 %v149, 1.442695
      %v151 = vpow.pop %v150
      %v152 = vsub.f32 %v151, 1.0
      %v153 = vrcp.pop %v148
      %v154 = vmul.f32 %v148, %v153
      %v155 = vsub.f32 1.0, %v154
      %v156 = vmul.f32 %v153, %v155
      %v157 = vadd.f32 %v153, %v156
      %vm158 = vweird.f32 %v148
      %vm159 = vweird.f32 %v153
      %vm160 = vmor %vm158, %vm159
      %v161 = vsel %vm160, %v153, %v157
      %v162 = vand.u32 2147483647, %v148
      %vm163 = vcmp.eq.f32.partialorder %v162, 8.507059e+37
      %v164 = vand.u32 %v148, 2147483648
      %v165 = vor.u32 1.1754944e-38, %v164
      %v166 = vsel %vm163, %v165, %v161
      %v167 = vmul.f32 %v152, %v166
      %v168 = vadd.f32 %v167, %v148
      %169 = vst [vmem:[#allocation2] sm:$0xff] %v168
    $region61: #{tpu_custom_call.1} parent=1 // pred_fallthru
      _
    %v170 = vld [vmem:[#allocation2] sm:$0xff]
    %v171 = vld [vmem:[#allocation8] sm:$0xff]
    %v172 = vld [vmem:[#allocation8 + $0x8] sm:$0xff]
    %v173 = vld [vmem:[#allocation8 + $0x10] sm:$0xff]
    %v174 = vld [vmem:[#allocation8 + $0x18] sm:$0xff]
    %v175 = vld [vmem:[#allocation8 + $0x20] sm:$0xff]
    %v176 = vld [vmem:[#allocation8 + $0x28] sm:$0xff]
    %v177 = vld [vmem:[#allocation8 + $0x30] sm:$0xff]
    %v178 = vld [vmem:[#allocation8 + $0x38] sm:$0xff]
    %v179 = vld [vmem:[#allocation8 + $0x40] sm:$0xff]
    %v180 = vld [vmem:[#allocation8 + $0x48] sm:$0xff]
    %v181 = vld [vmem:[#allocation8 + $0x50] sm:$0xff]
    %v182 = vld [vmem:[#allocation8 + $0x58] sm:$0xff]
    %v183 = vld [vmem:[#allocation8 + $0x60] sm:$0xff]
    %v184 = vld [vmem:[#allocation8 + $0x68] sm:$0xff]
    %v185 = vld [vmem:[#allocation8 + $0x70] sm:$0xff]
    %v186 = vld [vmem:[#allocation8 + $0x78] sm:$0xff]
    %v187 = vld [vmem:[%s5] sm:$0x1]
    %v189 = vperm.slane %v187, 0
    %191 = vmatpush.msra.mxu0 %v186
    %192 = vmatpush.msra.mxu0 %v185
    %193 = vmatpush.msra.mxu0 %v184
    %194 = vmatpush.msra.mxu0 %v183
    %195 = vmatpush.msra.mxu0 %v182
    %196 = vmatpush.msra.mxu0 %v181
    %197 = vmatpush.msra.mxu0 %v180
    %198 = vmatpush.msra.mxu0 %v179
    %199 = vmatpush.msra.mxu0 %v178
    %200 = vmatpush.msra.mxu0 %v177
    %201 = vmatpush.msra.mxu0 %v176
    %202 = vmatpush.msra.mxu0 %v175
    %203 = vmatpush.msra.mxu0 %v174
    %204 = vmatpush.msra.mxu0 %v173
    %205 = vmatpush.msra.mxu0 %v172
    %206 = vmatpush.msra.mxu0 %v171
    %207 = vmatmul.f32.gmra.mxu0 %v170
    %v208 = vpop.f32.mrf.mxu0
    %v209 = vadd.f32 %v189, %v208
    %210 = vdwg.mxu0
    %211 = vst [vmem:[#allocation2] sm:$0xff] %v209
    %s212 = sld [smem:[#allocation3 + $0x1]]
    %vm213 = vcmp.lt.s32.totalorder %v110, 64
    %p214 = scmp.lt.f32.partialorder %s212, 0.0
    // Predicated region
    $region62: #{tpu_custom_call.1} parent=1 // pred_check
      %p215 = pneg %p214
    $region63: #{tpu_custom_call.1} parent=1 // pred_check_branch
      %217 = sbr.rel (%p215) target = $region65
    $region64: #{tpu_custom_call.1} parent=1 // pred_region
      %v218 = vld [vmem:[#allocation2] sm:$0xff]
      %v219 = vstv %s212
      %v220 = vadd.f32 %v218, %v219
      %v221 = vmul.f32 %v219, %v220
      %v222 = vsub.f32 1.0, %v221
      %v223 = vlog2.pop %v222
      %v224 = vmul.f32 %v223, 0.6931472
      %v225 = vsub.f32 0.0, %v224
      %v226 = vrcp.pop %v219
      %v227 = vmul.f32 %v219, %v226
      %v228 = vsub.f32 1.0, %v227
      %v229 = vmul.f32 %v226, %v228
      %v230 = vadd.f32 %v226, %v229
      %vm231 = vweird.f32 %v219
      %vm232 = vweird.f32 %v226
      %vm233 = vmor %vm231, %vm232
      %v234 = vsel %vm233, %v226, %v230
      %v235 = vand.u32 2147483647, %v219
      %vm236 = vcmp.eq.f32.partialorder %v235, 8.507059e+37
      %v237 = vand.u32 %v219, 2147483648
      %v238 = vor.u32 1.1754944e-38, %v237
      %v239 = vsel %vm236, %v238, %v234
      %v240 = vmul.f32 %v225, %v239
      %v241 = vsel %vm213, 1, 0
      %vm242 = vcmp.eq.s32.totalorder %v241, 1
      %v243 = vsel %vm242, %v240, 0.0
      %244 = vst [vmem:[#allocation2] sm:$0xff] %v243
    $region65: #{tpu_custom_call.1} parent=1 // pred_fallthru
      _
    %p245 = scmp.gt.f32.partialorder %s212, 0.0
    // Predicated region
    $region66: #{tpu_custom_call.1} parent=1 // pred_check
      %p246 = pneg %p245
    $region67: #{tpu_custom_call.1} parent=1 // pred_check_branch
      %248 = sbr.rel (%p246) target = $region69
    $region68: #{tpu_custom_call.1} parent=1 // pred_region
      %v249 = vld [vmem:[#allocation2] sm:$0xff]
      %v250 = vstv %s212
      %v251 = vmul.f32 %v250, %v249
      %v252 = vmul.f32 %v251, 1.442695
      %v253 = vpow.pop %v252
      %v254 = vsub.f32 %v253, 1.0
      %v255 = vrcp.pop %v250
      %v256 = vmul.f32 %v250, %v255
      %v257 = vsub.f32 1.0, %v256
      %v258 = vmul.f32 %v255, %v257
      %v259 = vadd.f32 %v255, %v258
      %vm260 = vweird.f32 %v250
      %vm261 = vweird.f32 %v255
      %vm262 = vmor %vm260, %vm261
      %v263 = vsel %vm262, %v255, %v259
      %v264 = vand.u32 2147483647, %v250
      %vm265 = vcmp.eq.f32.partialorder %v264, 8.507059e+37
      %v266 = vand.u32 %v250, 2147483648
      %v267 = vor.u32 1.1754944e-38, %v266
      %v268 = vsel %vm265, %v267, %v263
      %v269 = vmul.f32 %v254, %v268
      %v270 = vadd.f32 %v269, %v250
      %271 = vst [vmem:[#allocation2] sm:$0xff] %v270
    $region69: #{tpu_custom_call.1} parent=1 // pred_fallthru
      _
    %v272 = vld [vmem:[#allocation2] sm:$0xff]
    %v273 = vld [vmem:[#allocation10] sm:$0xff]
    %v274 = vld [vmem:[#allocation10 + $0x8] sm:$0xff]
    %v275 = vld [vmem:[#allocation10 + $0x10] sm:$0xff]
    %v276 = vld [vmem:[#allocation10 + $0x18] sm:$0xff]
    %v277 = vld [vmem:[#allocation10 + $0x20] sm:$0xff]
    %v278 = vld [vmem:[#allocation10 + $0x28] sm:$0xff]
    %v279 = vld [vmem:[#allocation10 + $0x30] sm:$0xff]
    %v280 = vld [vmem:[#allocation10 + $0x38] sm:$0xff]
    %v281 = vld [vmem:[#allocation10 + $0x40] sm:$0xff]
    %v282 = vld [vmem:[#allocation10 + $0x48] sm:$0xff]
    %v283 = vld [vmem:[#allocation10 + $0x50] sm:$0xff]
    %v284 = vld [vmem:[#allocation10 + $0x58] sm:$0xff]
    %v285 = vld [vmem:[#allocation10 + $0x60] sm:$0xff]
    %v286 = vld [vmem:[#allocation10 + $0x68] sm:$0xff]
    %v287 = vld [vmem:[#allocation10 + $0x70] sm:$0xff]
    %v288 = vld [vmem:[#allocation10 + $0x78] sm:$0xff]
    %v289 = vld [vmem:[%s6] sm:$0x1]
    %v291 = vperm.slane %v289, 0
    %293 = vmatpush.msra.mxu0 %v288
    %294 = vmatpush.msra.mxu0 %v287
    %295 = vmatpush.msra.mxu0 %v286
    %296 = vmatpush.msra.mxu0 %v285
    %297 = vmatpush.msra.mxu0 %v284
    %298 = vmatpush.msra.mxu0 %v283
    %299 = vmatpush.msra.mxu0 %v282
    %300 = vmatpush.msra.mxu0 %v281
    %301 = vmatpush.msra.mxu0 %v280
    %302 = vmatpush.msra.mxu0 %v279
    %303 = vmatpush.msra.mxu0 %v278
    %304 = vmatpush.msra.mxu0 %v277
    %305 = vmatpush.msra.mxu0 %v276
    %306 = vmatpush.msra.mxu0 %v275
    %307 = vmatpush.msra.mxu0 %v274
    %308 = vmatpush.msra.mxu0 %v273
    %309 = vmatmul.f32.gmra.mxu0 %v272
    %v310 = vpop.f32.mrf.mxu0
    %v311 = vadd.f32 %v291, %v310
    %312 = vdwg.mxu0
    %313 = vst [vmem:[#allocation2] sm:$0xff] %v311
    %v314 = vld [vmem:[#allocation2] sm:$0xff]
    %v315 = vld [vmem:[#allocation11] sm:$0xff]
    %v316 = vld [vmem:[#allocation11 + $0x8] sm:$0xff]
    %v317 = vld [vmem:[#allocation11 + $0x10] sm:$0xff]
    %v318 = vld [vmem:[#allocation11 + $0x18] sm:$0xff]
    %v319 = vld [vmem:[#allocation11 + $0x20] sm:$0xff]
    %v320 = vld [vmem:[#allocation11 + $0x28] sm:$0xff]
    %v321 = vld [vmem:[#allocation11 + $0x30] sm:$0xff]
    %v322 = vld [vmem:[#allocation11 + $0x38] sm:$0xff]
    %v323 = vld [vmem:[#allocation11 + $0x40] sm:$0xff]
    %v324 = vld [vmem:[#allocation11 + $0x48] sm:$0xff]
    %v325 = vld [vmem:[#allocation11 + $0x50] sm:$0xff]
    %v326 = vld [vmem:[#allocation11 + $0x58] sm:$0xff]
    %v327 = vld [vmem:[#allocation11 + $0x60] sm:$0xff]
    %v328 = vld [vmem:[#allocation11 + $0x68] sm:$0xff]
    %v329 = vld [vmem:[#allocation11 + $0x70] sm:$0xff]
    %v330 = vld [vmem:[#allocation11 + $0x78] sm:$0xff]
    %v331 = vld [vmem:[%s7] sm:$0x1]
    %v333 = vperm.slane %v331, 0
    %335 = vmatpush.msra.mxu0 %v330
    %336 = vmatpush.msra.mxu0 %v329
    %337 = vmatpush.msra.mxu0 %v328
    %338 = vmatpush.msra.mxu0 %v327
    %339 = vmatpush.msra.mxu0 %v326
    %340 = vmatpush.msra.mxu0 %v325
    %341 = vmatpush.msra.mxu0 %v324
    %342 = vmatpush.msra.mxu0 %v323
    %343 = vmatpush.msra.mxu0 %v322
    %344 = vmatpush.msra.mxu0 %v321
    %345 = vmatpush.msra.mxu0 %v320
    %346 = vmatpush.msra.mxu0 %v319
    %347 = vmatpush.msra.mxu0 %v318
    %348 = vmatpush.msra.mxu0 %v317
    %349 = vmatpush.msra.mxu0 %v316
    %350 = vmatpush.msra.mxu0 %v315
    %351 = vmatmul.f32.gmra.mxu0 %v314
    %v352 = vpop.f32.mrf.mxu0
    %v353 = vadd.f32 %v333, %v352
    %354 = vdwg.mxu0
    %vm355 = vcmask 130048
    %356 = vst.msk [vmem:[#allocation13] sm:$0xff] %vm355, %v353
    // Predicated region
    $region70: #{tpu_custom_call.1} parent=1 // pred_check
      _
    $region71: #{tpu_custom_call.1} parent=1 // pred_check_branch
      %358 = sbr.rel (0) target = $region73
    $region72: #{tpu_custom_call.1} parent=1 // pred_region
      %360 = vsyncadd [#allocation5], 0
      %s362 = sshll.u32 [#allocation13], 4
      %s363 = int_to_ptr.vmem [resolvable:$true] %s362
      %s364 = sshll.u32 %s8, 4
      %s365 = int_to_ptr.hbm [resolvable:$true] %s364
      %367 = dma.vmem_to_hbm [thread:$0]  %s363, 128, %s365, [#allocation5]
    $region73: #{tpu_custom_call.1} parent=1 // pred_fallthru
      _
    // Predicated region
    $region74: #{tpu_custom_call.1} parent=1 // pred_check
      _
    $region75: #{tpu_custom_call.1} parent=1 // pred_check_branch
      %369 = sbr.rel (0) target = $region77
    $region76: #{tpu_custom_call.1} parent=1 // pred_region
      %371 = dma.done [#allocation5], 128
    $region77: #{tpu_custom_call.1} parent=1 // pred_fallthru
      _
    %372 = vsyncpa [#allocation4], 1
    %373 = vsyncpa [#allocation9], 1
    %374 = vsyncpa [#allocation12], 1
    %375 = vsyncpa [#allocation5], 1
    %376 = vsyncpa [#allocation6], 1

</llo_original>
